<compile_context>
chip_gen: v5e
topology: v5e:2x2
jax: 0.10.0
libtpu: 0.0.40
codegen_flags: <defaults>
</compile_context>

<pallas_src>
import functools
import math

import jax
import jax.numpy as jnp
from jax import lax
from jax.experimental import pallas as pl
from jax.experimental.pallas import tpu as pltpu


def _round_up(n, m):
    return ((n + m - 1) // m) * m


def ln_mlp_residual_kernel(x_ref, g_ref, be_ref, w1_ref, b1_ref, w2_ref, b2_ref,
                           o_ref, ln_s, acc_s, *, eps):
    k = pl.program_id(1)

    @pl.when(k == 0)
    def _():
        # LayerNorm in f32 (biased variance + eps inside rsqrt, like nn.LayerNorm).
        x = x_ref[...].astype(jnp.float32)
        mu = jnp.mean(x, axis=-1, keepdims=True)
        xc = x - mu
        var = jnp.mean(xc * xc, axis=-1, keepdims=True)
        ln = xc * lax.rsqrt(var + eps)
        ln = ln * g_ref[...].astype(jnp.float32) + be_ref[...].astype(jnp.float32)
        # Store in the weight dtype so the MXU gets its native fast path
        # (bf16 weights -> bf16 operands); reused across all H tiles.
        ln_s[...] = ln.astype(ln_s.dtype)
        acc_s[...] = jnp.zeros_like(acc_s)

    # fc1 partial for this H tile: (tm, D) @ (D, tH) -> f32, plus bias slice.
    h = jnp.dot(ln_s[...], w1_ref[...], preferred_element_type=jnp.float32)
    h = h + b1_ref[...].astype(jnp.float32)

    # Exact (erf) GELU -- matches torch.nn.GELU() default.
    h = 0.5 * h * (1.0 + lax.erf(h * (1.0 / math.sqrt(2.0))))

    # fc2 partial sum: (tm, tH) @ (tH, D), accumulated in f32.
    acc_s[...] += jnp.dot(h.astype(w2_ref.dtype), w2_ref[...],
                          preferred_element_type=jnp.float32)

    @pl.when(k == pl.num_programs(1) - 1)
    def _():
        out = (acc_s[...] + b2_ref[...].astype(jnp.float32)
               + x_ref[...].astype(jnp.float32))          # residual add
        o_ref[...] = out.astype(o_ref.dtype)


def ln_mlp_residual(x2, gamma, beta, w1, b1, w2, b2, *, tm=256, th=None, eps=1e-5):
    """x2: (M, D). Returns x2 + fc2(gelu(fc1(layernorm(x2))))."""
    M, D = x2.shape
    H = w1.shape[1]

    # Hidden-dim tile: prefer lane-dense multiples of 128 that divide H.
    if th is None:
        th = H
        for cand in (512, 256, 128):
            if H % cand == 0:
                th = cand
                break

    # Row tile: big for MXU occupancy; pad rows so the grid divides evenly.
    tm_eff = min(tm, _round_up(M, 8))
    m_pad = _round_up(M, tm_eff)
    x_in = jnp.pad(x2, ((0, m_pad - M), (0, 0))) if m_pad != M else x2

    param_dtype = w1.dtype
    itemsize = int(jnp.dtype(x2.dtype).itemsize)
    cost = pl.CostEstimate(
        flops=4 * m_pad * D * H + 8 * m_pad * D,
        transcendentals=m_pad * H,
        bytes_accessed=(2 * m_pad * D + 2 * D * H + H + 4 * D) * itemsize,
    )

    kernel = functools.partial(ln_mlp_residual_kernel, eps=eps)

    out = pl.pallas_call(
        kernel,
        out_shape=jax.ShapeDtypeStruct((m_pad, D), x2.dtype),
        grid_spec=pltpu.PrefetchScalarGridSpec(
            num_scalar_prefetch=0,
            grid=(m_pad // tm_eff, H // th),
            in_specs=[
                pl.BlockSpec((tm_eff, D), lambda i, k: (i, 0)),  # x rows (resident across k)
                pl.BlockSpec((1, D), lambda i, k: (0, 0)),       # LN gamma
                pl.BlockSpec((1, D), lambda i, k: (0, 0)),       # LN beta
                pl.BlockSpec((D, th), lambda i, k: (0, k)),      # W1 tile (D, tH)
                pl.BlockSpec((1, th), lambda i, k: (0, k)),      # b1 tile
                pl.BlockSpec((th, D), lambda i, k: (k, 0)),      # W2 tile (tH, D)
                pl.BlockSpec((1, D), lambda i, k: (0, 0)),       # b2
            ],
            out_specs=pl.BlockSpec((tm_eff, D), lambda i, k: (i, 0)),
            scratch_shapes=[
                pltpu.VMEM((tm_eff, D), param_dtype),   # layernorm(x), reused over k
                pltpu.VMEM((tm_eff, D), jnp.float32),   # fc2 accumulator
            ],
        ),
        compiler_params=pltpu.CompilerParams(
            dimension_semantics=("parallel", "arbitrary"),
            vmem_limit_bytes=48 * 1024 * 1024,
        ),
        cost_estimate=cost,
    )(x_in, gamma.reshape(1, D), beta.reshape(1, D),
      w1, b1.reshape(1, H), w2, b2.reshape(1, D))

    return out[:M] if m_pad != M else out


def conv_mlp_block_forward(x, params, *, tm=256):
    """x: (B, H, W, hidden). Matches ConvMLPBlock.forward's returned value."""
    B, Hh, Ww, D = x.shape
    x2 = x.reshape(-1, D)
    g1, be1, w1a, b1a, w2a, b2a = params["conv_mlp_1"]
    g2, be2, w1b, b1b, w2b, b2b = params["conv_mlp_2"]

    y1 = ln_mlp_residual(x2, g1, be1, w1a, b1a, w2a, b2a, tm=tm)
    # NOTE: the reference forward computes
    #   out = de_conv(de_conv_norm(x).permute(0,3,1,2)).permute(0,2,3,1)
    # and then immediately reassigns out = conv_mlp_2(x); the depthwise conv
    # result never reaches the returned value, so it is intentionally omitted.
    y2 = ln_mlp_residual(y1, g2, be2, w1b, b1b, w2b, b2b, tm=tm)
    return y2.reshape(B, Hh, Ww, D)


def init_params(key, hidden_dim, expansion_factor, dtype=jnp.float32):
    """Deterministic init mimicking nn.Linear / nn.LayerNorm (weights pre-transposed to (in, out))."""
    H = hidden_dim * expansion_factor
    keys = jax.random.split(key, 12)

    def linear(kw, kb, fan_in, shape_w, shape_b):
        bound = 1.0 / math.sqrt(fan_in)
        w = jax.random.uniform(kw, shape_w, dtype, -bound, bound)
        b = jax.random.uniform(kb, shape_b, dtype, -bound, bound)
        return w, b

    def mlp(k0, k1, k2, k3):
        w1, b1 = linear(k0, k1, hidden_dim, (hidden_dim, H), (H,))
        w2, b2 = linear(k2, k3, H, (H, hidden_dim), (hidden_dim,))
        return w1, b1, w2, b2

    def ln(kg, kb):
        g = (1.0 + 0.1 * jax.random.normal(kg, (hidden_dim,))).astype(dtype)
        b = (0.1 * jax.random.normal(kb, (hidden_dim,))).astype(dtype)
        return g, b

    g1, be1 = ln(keys[0], keys[1])
    w1a, b1a, w2a, b2a = mlp(keys[2], keys[3], keys[4], keys[5])
    g2, be2 = ln(keys[6], keys[7])
    w1b, b1b, w2b, b2b = mlp(keys[8], keys[9], keys[10], keys[11])
    return {
        "conv_mlp_1": (g1, be1, w1a, b1a, w2a, b2a),
        "conv_mlp_2": (g2, be2, w1b, b1b, w2b, b2b),
    }


if __name__ == "__main__":
    key = jax.random.PRNGKey(0)
    batch, height, width, hidden_dim, expansion = 2, 8, 8, 32, 4

    kx, kp = jax.random.split(key)
    x = jax.random.normal(kx, (batch, height, width, hidden_dim), jnp.float32)
    params = init_params(kp, hidden_dim, expansion)

    out = conv_mlp_block_forward(x, params)
    jax.block_until_ready(out)

    # Pure-JAX reference of the effective forward (dead de_conv excluded since
    # its result never reaches the module output).
    def ref_block(x2, g, b, w1, b1_, w2, b2_, eps=1e-5):
        mu = jnp.mean(x2, -1, keepdims=True)
        var = jnp.mean((x2 - mu) ** 2, -1, keepdims=True)
        ln = (x2 - mu) * lax.rsqrt(var + eps) * g + b
        h = ln @ w1 + b1_
        h = 0.5 * h * (1.0 + lax.erf(h / math.sqrt(2.0)))
        return x2 + (h @ w2 + b2_)

    x2 = x.reshape(-1, hidden_dim)
    g1, be1, w1a, b1a, w2a, b2a = params["conv_mlp_1"]
    g2, be2, w1b, b1b, w2b, b2b = params["conv_mlp_2"]
    y1 = ref_block(x2, g1, be1, w1a, b1a, w2a, b2a)
    y2 = ref_block(y1, g2, be2, w1b, b1b, w2b, b2b)
    out_ref = y2.reshape(batch, height, width, hidden_dim)

    assert jnp.allclose(out, out_ref, atol=1e-4, rtol=1e-4), "mismatch vs reference"
    print("KERNEL_OK")
</pallas_src>

<mosaic_0001>
module attributes {stable_mosaic.version = 11 : i64} {
  func.func @ln_mlp_residual_kernel(%arg0: i32, %arg1: i32, %arg2: memref<128x32xf32, #tpu.memory_space<vmem>>, %arg3: memref<1x32xf32, #tpu.memory_space<vmem>>, %arg4: memref<1x32xf32, #tpu.memory_space<vmem>>, %arg5: memref<32x128xf32, #tpu.memory_space<vmem>>, %arg6: memref<1x128xf32, #tpu.memory_space<vmem>>, %arg7: memref<128x32xf32, #tpu.memory_space<vmem>>, %arg8: memref<1x32xf32, #tpu.memory_space<vmem>>, %arg9: memref<128x32xf32, #tpu.memory_space<vmem>>, %arg10: memref<128x32xf32, #tpu.memory_space<vmem>>, %arg11: memref<128x32xf32, #tpu.memory_space<vmem>>) attributes {dimension_semantics = [#tpu.dimension_semantics<parallel>, #tpu.dimension_semantics<arbitrary>], iteration_bounds = array<i64: 1, 1>, scalar_prefetch = 0 : i64, scratch_operands = 2 : i64, tpu.core_type = #tpu.core_type<tc>, window_params = [{transform_indices = @transform_0, window_bounds = array<i64: 128, 32>}, {pipeline_mode = #tpu.pipeline_mode<synchronous>, transform_indices = @transform_1, window_bounds = array<i64: 1, 32>}, {pipeline_mode = #tpu.pipeline_mode<synchronous>, transform_indices = @transform_2, window_bounds = array<i64: 1, 32>}, {transform_indices = @transform_3, window_bounds = array<i64: 32, 128>}, {transform_indices = @transform_4, window_bounds = array<i64: 1, 128>}, {transform_indices = @transform_5, window_bounds = array<i64: 128, 32>}, {pipeline_mode = #tpu.pipeline_mode<synchronous>, transform_indices = @transform_6, window_bounds = array<i64: 1, 32>}, {transform_indices = @transform_7, window_bounds = array<i64: 128, 32>}]} {
    %c0_i32 = arith.constant 0 : i32
    %0 = arith.cmpi eq, %arg1, %c0_i32 : i32
    %1 = arith.extui %0 : i1 to i32
    %c0_i32_0 = arith.constant 0 : i32
    %2 = arith.cmpi ne, %1, %c0_i32_0 : i32
    scf.if %2 {
      %c0_18 = arith.constant 0 : index
      %c0_19 = arith.constant 0 : index
      %25 = vector.load %arg2[%c0_18, %c0_19] : memref<128x32xf32, #tpu.memory_space<vmem>>, vector<128x32xf32>
      %cst_20 = arith.constant dense<0.000000e+00> : vector<128xf32>
      %26 = vector.multi_reduction <add>, %25, %cst_20 [1] : vector<128x32xf32> to vector<128xf32>
      %27 = vector.shape_cast %26 : vector<128xf32> to vector<128x1xf32>
      %cst_21 = arith.constant 3.200000e+01 : f32
      %28 = vector.broadcast %cst_21 : f32 to vector<128x1xf32>
      %29 = arith.divf %27, %28 : vector<128x1xf32>
      %30 = vector.broadcast %29 : vector<128x1xf32> to vector<128x32xf32>
      %31 = arith.subf %25, %30 : vector<128x32xf32>
      %32 = arith.mulf %31, %31 : vector<128x32xf32>
      %cst_22 = arith.constant dense<0.000000e+00> : vector<128xf32>
      %33 = vector.multi_reduction <add>, %32, %cst_22 [1] : vector<128x32xf32> to vector<128xf32>
      %34 = vector.shape_cast %33 : vector<128xf32> to vector<128x1xf32>
      %cst_23 = arith.constant 3.200000e+01 : f32
      %35 = vector.broadcast %cst_23 : f32 to vector<128x1xf32>
      %36 = arith.divf %34, %35 : vector<128x1xf32>
      %cst_24 = arith.constant 9.99999974E-6 : f32
      %37 = vector.broadcast %cst_24 : f32 to vector<128x1xf32>
      %38 = arith.addf %36, %37 : vector<128x1xf32>
      %39 = math.rsqrt %38 : vector<128x1xf32>
      %40 = vector.broadcast %39 : vector<128x1xf32> to vector<128x32xf32>
      %41 = arith.mulf %31, %40 : vector<128x32xf32>
      %c0_25 = arith.constant 0 : index
      %c0_26 = arith.constant 0 : index
      %42 = vector.load %arg3[%c0_25, %c0_26] : memref<1x32xf32, #tpu.memory_space<vmem>>, vector<1x32xf32>
      %43 = vector.broadcast %42 : vector<1x32xf32> to vector<128x32xf32>
      %44 = arith.mulf %41, %43 : vector<128x32xf32>
      %c0_27 = arith.constant 0 : index
      %c0_28 = arith.constant 0 : index
      %45 = vector.load %arg4[%c0_27, %c0_28] : memref<1x32xf32, #tpu.memory_space<vmem>>, vector<1x32xf32>
      %46 = vector.broadcast %45 : vector<1x32xf32> to vector<128x32xf32>
      %47 = arith.addf %44, %46 : vector<128x32xf32>
      %c0_29 = arith.constant 0 : index
      %c0_30 = arith.constant 0 : index
      %48 = vector.load %arg10[%c0_29, %c0_30] : memref<128x32xf32, #tpu.memory_space<vmem>>, vector<128x32xf32>
      tpu.vector_store %arg10[%c0_29, %c0_30], %47 {strides = array<i32>} : memref<128x32xf32, #tpu.memory_space<vmem>>, vector<128x32xf32>,
      %cst_31 = arith.constant 0.000000e+00 : f32
      %49 = vector.broadcast %cst_31 : f32 to vector<128x32xf32>
      %c0_32 = arith.constant 0 : index
      %c0_33 = arith.constant 0 : index
      %50 = vector.load %arg11[%c0_32, %c0_33] : memref<128x32xf32, #tpu.memory_space<vmem>>, vector<128x32xf32>
      tpu.vector_store %arg11[%c0_32, %c0_33], %49 {strides = array<i32>} : memref<128x32xf32, #tpu.memory_space<vmem>>, vector<128x32xf32>,
    } else {
    }
    %c0 = arith.constant 0 : index
    %c0_1 = arith.constant 0 : index
    %3 = vector.load %arg10[%c0, %c0_1] : memref<128x32xf32, #tpu.memory_space<vmem>>, vector<128x32xf32>
    %c0_2 = arith.constant 0 : index
    %c0_3 = arith.constant 0 : index
    %4 = vector.load %arg5[%c0_2, %c0_3] : memref<32x128xf32, #tpu.memory_space<vmem>>, vector<32x128xf32>
    %cst = arith.constant dense<0.000000e+00> : vector<128x128xf32>
    %5 = tpu.matmul %3, %4, %cst {dimension_numbers = #tpu.dot_dimension_numbers<[1], [0], [0], [1], [0, 0, 1, 1], [], []>} : vector<128x32xf32>, vector<32x128xf32>, vector<128x128xf32> -> vector<128x128xf32>
    %c0_4 = arith.constant 0 : index
    %c0_5 = arith.constant 0 : index
    %6 = vector.load %arg6[%c0_4, %c0_5] : memref<1x128xf32, #tpu.memory_space<vmem>>, vector<1x128xf32>
    %7 = vector.broadcast %6 : vector<1x128xf32> to vector<128x128xf32>
    %8 = arith.addf %5, %7 : vector<128x128xf32>
    %cst_6 = arith.constant 5.000000e-01 : f32
    %9 = vector.broadcast %cst_6 : f32 to vector<128x128xf32>
    %10 = arith.mulf %9, %8 : vector<128x128xf32>
    %cst_7 = arith.constant 0.707106769 : f32
    %11 = vector.broadcast %cst_7 : f32 to vector<128x128xf32>
    %12 = arith.mulf %8, %11 : vector<128x128xf32>
    %13 = math.erf %12 : vector<128x128xf32>
    %cst_8 = arith.constant 1.000000e+00 : f32
    %14 = vector.broadcast %cst_8 : f32 to vector<128x128xf32>
    %15 = arith.addf %14, %13 : vector<128x128xf32>
    %16 = arith.mulf %10, %15 : vector<128x128xf32>
    %c0_9 = arith.constant 0 : index
    %c0_10 = arith.constant 0 : index
    %17 = vector.load %arg11[%c0_9, %c0_10] : memref<128x32xf32, #tpu.memory_space<vmem>>, vector<128x32xf32>
    %c0_11 = arith.constant 0 : index
    %c0_12 = arith.constant 0 : index
    %18 = vector.load %arg7[%c0_11, %c0_12] : memref<128x32xf32, #tpu.memory_space<vmem>>, vector<128x32xf32>
    %cst_13 = arith.constant dense<0.000000e+00> : vector<128x32xf32>
    %19 = tpu.matmul %16, %18, %cst_13 {dimension_numbers = #tpu.dot_dimension_numbers<[1], [0], [0], [1], [0, 0, 1, 1], [], []>} : vector<128x128xf32>, vector<128x32xf32>, vector<128x32xf32> -> vector<128x32xf32>
    %20 = arith.addf %17, %19 : vector<128x32xf32>
    %c0_14 = arith.constant 0 : index
    %c0_15 = arith.constant 0 : index
    %21 = vector.load %arg11[%c0_14, %c0_15] : memref<128x32xf32, #tpu.memory_space<vmem>>, vector<128x32xf32>
    tpu.vector_store %arg11[%c0_14, %c0_15], %20 {strides = array<i32>} : memref<128x32xf32, #tpu.memory_space<vmem>>, vector<128x32xf32>,
    %c0_i32_16 = arith.constant 0 : i32
    %22 = arith.cmpi eq, %arg1, %c0_i32_16 : i32
    %23 = arith.extui %22 : i1 to i32
    %c0_i32_17 = arith.constant 0 : i32
    %24 = arith.cmpi ne, %23, %c0_i32_17 : i32
    scf.if %24 {
      %c0_18 = arith.constant 0 : index
      %c0_19 = arith.constant 0 : index
      %25 = vector.load %arg11[%c0_18, %c0_19] : memref<128x32xf32, #tpu.memory_space<vmem>>, vector<128x32xf32>
      %c0_20 = arith.constant 0 : index
      %c0_21 = arith.constant 0 : index
      %26 = vector.load %arg8[%c0_20, %c0_21] : memref<1x32xf32, #tpu.memory_space<vmem>>, vector<1x32xf32>
      %27 = vector.broadcast %26 : vector<1x32xf32> to vector<128x32xf32>
      %28 = arith.addf %25, %27 : vector<128x32xf32>
      %c0_22 = arith.constant 0 : index
      %c0_23 = arith.constant 0 : index
      %29 = vector.load %arg2[%c0_22, %c0_23] : memref<128x32xf32, #tpu.memory_space<vmem>>, vector<128x32xf32>
      %30 = arith.addf %28, %29 : vector<128x32xf32>
      %c0_24 = arith.constant 0 : index
      %c0_25 = arith.constant 0 : index
      %31 = vector.load %arg9[%c0_24, %c0_25] : memref<128x32xf32, #tpu.memory_space<vmem>>, vector<128x32xf32>
      tpu.vector_store %arg9[%c0_24, %c0_25], %30 {strides = array<i32>} : memref<128x32xf32, #tpu.memory_space<vmem>>, vector<128x32xf32>,
    } else {
    }
    return
  }
  func.func @transform_0(%arg0: i32, %arg1: i32) -> (i32, i32) {
    %c0_i32 = arith.constant 0 : i32
    %c0_i32_0 = arith.constant 0 : i32
    return %arg0, %c0_i32 : i32, i32
  }
  func.func @transform_1(%arg0: i32, %arg1: i32) -> (i32, i32) {
    %c0_i32 = arith.constant 0 : i32
    %c0_i32_0 = arith.constant 0 : i32
    %c0_i32_1 = arith.constant 0 : i32
    return %c0_i32, %c0_i32_0 : i32, i32
  }
  func.func @transform_2(%arg0: i32, %arg1: i32) -> (i32, i32) {
    %c0_i32 = arith.constant 0 : i32
    %c0_i32_0 = arith.constant 0 : i32
    %c0_i32_1 = arith.constant 0 : i32
    return %c0_i32, %c0_i32_0 : i32, i32
  }
  func.func @transform_3(%arg0: i32, %arg1: i32) -> (i32, i32) {
    %c0_i32 = arith.constant 0 : i32
    %c0_i32_0 = arith.constant 0 : i32
    return %c0_i32, %arg1 : i32, i32
  }
  func.func @transform_4(%arg0: i32, %arg1: i32) -> (i32, i32) {
    %c0_i32 = arith.constant 0 : i32
    %c0_i32_0 = arith.constant 0 : i32
    return %c0_i32, %arg1 : i32, i32
  }
  func.func @transform_5(%arg0: i32, %arg1: i32) -> (i32, i32) {
    %c0_i32 = arith.constant 0 : i32
    %c0_i32_0 = arith.constant 0 : i32
    return %arg1, %c0_i32 : i32, i32
  }
  func.func @transform_6(%arg0: i32, %arg1: i32) -> (i32, i32) {
    %c0_i32 = arith.constant 0 : i32
    %c0_i32_0 = arith.constant 0 : i32
    %c0_i32_1 = arith.constant 0 : i32
    return %c0_i32, %c0_i32_0 : i32, i32
  }
  func.func @transform_7(%arg0: i32, %arg1: i32) -> (i32, i32) {
    %c0_i32 = arith.constant 0 : i32
    %c0_i32_0 = arith.constant 0 : i32
    return %arg0, %c0_i32 : i32, i32
  }
}

</mosaic_0001>

<llo_original>
// kernel: tpu_custom_call.1
$region0: #{tpu_custom_call.1}
  #allocation0 [shape = 'u32[]', space=smem, size = 0x4, offset = 0x4, fixed_abs, tag = 'smem constant byte address 0x4 - core index']
  #allocation1 [shape = 'u32[72,128]{1,0:T(1,128)}', space=vmem, size = 0x9000, scoped, tag = 'internal scratch']
  #allocation2 [shape = 'f32[128,32]{1,0:T(8,128)}', space=vmem, size = 0x10000, scoped, tag = 'scratch operand']
  #allocation3 [shape = 'f32[128,32]{1,0:T(8,128)}', space=vmem, size = 0x10000, scoped, tag = 'scratch operand']
  %s0 = inlined_call_operand.vmem [shape: f32[128,32], index: 0, kind: input, shape index: {}]
  %s1 = inlined_call_operand.vmem [shape: f32[1,32], index: 1, kind: input, shape index: {}]
  %s2 = inlined_call_operand.vmem [shape: f32[1,32], index: 2, kind: input, shape index: {}]
  %s3 = inlined_call_operand.vmem [shape: f32[32,128], index: 3, kind: input, shape index: {}]
  %s4 = inlined_call_operand.vmem [shape: f32[1,128], index: 4, kind: input, shape index: {}]
  %s5 = inlined_call_operand.vmem [shape: f32[128,32], index: 5, kind: input, shape index: {}]
  %s6 = inlined_call_operand.vmem [shape: f32[1,32], index: 6, kind: input, shape index: {}]
  %s7 = inlined_call_operand.vmem [shape: f32[128,32], index: 7, kind: output, shape index: {}]
  %s8 = sld [smem:[#allocation0]]
  $region46: #{tpu_custom_call.1} parent=0
    _
  %s10 = ssub.s32 1, %s8
  %s11 = scalar_select 0, %s10, %s8
  // Predicated region
  $region2: #{tpu_custom_call.1} parent=0 // pred_check
    _
  $region3: #{tpu_custom_call.1} parent=0 // pred_check_branch
    %13 = sbr.rel (0) target = $region5
  $region4: #{tpu_custom_call.1} parent=0 // pred_region
    _
  $region5: #{tpu_custom_call.1} parent=0 // pred_fallthru
    _
  // Predicated region
  $region6: #{tpu_custom_call.1} parent=0 // pred_check
    _
  $region7: #{tpu_custom_call.1} parent=0 // pred_check_branch
    %15 = sbr.rel (0) target = $region9
  $region8: #{tpu_custom_call.1} parent=0 // pred_region
    _
  $region9: #{tpu_custom_call.1} parent=0 // pred_fallthru
    _
  // Predicated region
  $region10: #{tpu_custom_call.1} parent=0 // pred_check
    _
  $region11: #{tpu_custom_call.1} parent=0 // pred_check_branch
    %17 = sbr.rel (0) target = $region13
  $region12: #{tpu_custom_call.1} parent=0 // pred_region
    _
  $region13: #{tpu_custom_call.1} parent=0 // pred_fallthru
    _
  // Predicated region
  $region14: #{tpu_custom_call.1} parent=0 // pred_check
    _
  $region15: #{tpu_custom_call.1} parent=0 // pred_check_branch
    %19 = sbr.rel (0) target = $region17
  $region16: #{tpu_custom_call.1} parent=0 // pred_region
    _
  $region17: #{tpu_custom_call.1} parent=0 // pred_fallthru
    _
  // Predicated region
  $region18: #{tpu_custom_call.1} parent=0 // pred_check
    _
  $region19: #{tpu_custom_call.1} parent=0 // pred_check_branch
    %21 = sbr.rel (0) target = $region21
  $region20: #{tpu_custom_call.1} parent=0 // pred_region
    _
  $region21: #{tpu_custom_call.1} parent=0 // pred_fallthru
    _
  // Predicated region
  $region22: #{tpu_custom_call.1} parent=0 // pred_check
    _
  $region23: #{tpu_custom_call.1} parent=0 // pred_check_branch
    %23 = sbr.rel (0) target = $region25
  $region24: #{tpu_custom_call.1} parent=0 // pred_region
    _
  $region25: #{tpu_custom_call.1} parent=0 // pred_fallthru
    _
  // Predicated region
  $region26: #{tpu_custom_call.1} parent=0 // pred_check
    _
  $region27: #{tpu_custom_call.1} parent=0 // pred_check_branch
    %25 = sbr.rel (0) target = $region29
  $region28: #{tpu_custom_call.1} parent=0 // pred_region
    _
  $region29: #{tpu_custom_call.1} parent=0 // pred_fallthru
    _
  %p26 = scmp.eq.s32.totalorder 0, 0
  // Predicated region
  $region30: #{tpu_custom_call.1} parent=0 // pred_check
    %p27 = pneg %p26
  $region31: #{tpu_custom_call.1} parent=0 // pred_check_branch
    %29 = sbr.rel (%p27) target = $region33
  $region32: #{tpu_custom_call.1} parent=0 // pred_region
    %v30 = vld [vmem:[%s0] sm:$0xff]
    %v31 = vld [vmem:[%s0 + $0x8] sm:$0xff]
    %v32 = vld [vmem:[%s0 + $0x10] sm:$0xff]
    %v33 = vld [vmem:[%s0 + $0x18] sm:$0xff]
    %v34 = vld [vmem:[%s0 + $0x20] sm:$0xff]
    %v35 = vld [vmem:[%s0 + $0x28] sm:$0xff]
    %v36 = vld [vmem:[%s0 + $0x30] sm:$0xff]
    %v37 = vld [vmem:[%s0 + $0x38] sm:$0xff]
    %v38 = vld [vmem:[%s0 + $0x40] sm:$0xff]
    %v39 = vld [vmem:[%s0 + $0x48] sm:$0xff]
    %v40 = vld [vmem:[%s0 + $0x50] sm:$0xff]
    %v41 = vld [vmem:[%s0 + $0x58] sm:$0xff]
    %v42 = vld [vmem:[%s0 + $0x60] sm:$0xff]
    %v43 = vld [vmem:[%s0 + $0x68] sm:$0xff]
    %v44 = vld [vmem:[%s0 + $0x70] sm:$0xff]
    %v45 = vld [vmem:[%s0 + $0x78] sm:$0xff]
    %vm46 = vcmask 261120
    %v47 = vsel %vm46, %v30, 0.0
    %48 = vadd.xlane.f32.xlu0 %v47
    %v49 = vpop.xlane.xlu0 %48
    %v50 = vsel %vm46, %v31, 0.0
    %51 = vadd.xlane.f32.xlu0 %v50
    %v52 = vpop.xlane.xlu0 %51
    %v53 = vsel %vm46, %v32, 0.0
    %54 = vadd.xlane.f32.xlu0 %v53
    %v55 = vpop.xlane.xlu0 %54
    %v56 = vsel %vm46, %v33, 0.0
    %57 = vadd.xlane.f32.xlu0 %v56
    %v58 = vpop.xlane.xlu0 %57
    %v59 = vsel %vm46, %v34, 0.0
    %60 = vadd.xlane.f32.xlu0 %v59
    %v61 = vpop.xlane.xlu0 %60
    %v62 = vsel %vm46, %v35, 0.0
    %63 = vadd.xlane.f32.xlu0 %v62
    %v64 = vpop.xlane.xlu0 %63
    %v65 = vsel %vm46, %v36, 0.0
    %66 = vadd.xlane.f32.xlu0 %v65
    %v67 = vpop.xlane.xlu0 %66
    %v68 = vsel %vm46, %v37, 0.0
    %69 = vadd.xlane.f32.xlu0 %v68
    %v70 = vpop.xlane.xlu0 %69
    %v71 = vsel %vm46, %v38, 0.0
    %72 = vadd.xlane.f32.xlu0 %v71
    %v73 = vpop.xlane.xlu0 %72
    %v74 = vsel %vm46, %v39, 0.0
    %75 = vadd.xlane.f32.xlu0 %v74
    %v76 = vpop.xlane.xlu0 %75
    %v77 = vsel %vm46, %v40, 0.0
    %78 = vadd.xlane.f32.xlu0 %v77
    %v79 = vpop.xlane.xlu0 %78
    %v80 = vsel %vm46, %v41, 0.0
    %81 = vadd.xlane.f32.xlu0 %v80
    %v82 = vpop.xlane.xlu0 %81
    %v83 = vsel %vm46, %v42, 0.0
    %84 = vadd.xlane.f32.xlu0 %v83
    %v85 = vpop.xlane.xlu0 %84
    %v86 = vsel %vm46, %v43, 0.0
    %87 = vadd.xlane.f32.xlu0 %v86
    %v88 = vpop.xlane.xlu0 %87
    %v89 = vsel %vm46, %v44, 0.0
    %90 = vadd.xlane.f32.xlu0 %v89
    %v91 = vpop.xlane.xlu0 %90
    %v92 = vsel %vm46, %v45, 0.0
    %93 = vadd.xlane.f32.xlu0 %v92
    %v94 = vpop.xlane.xlu0 %93
    %v95 = vrcp.pop 32.0
    %v96 = vmul.f32 32.0, %v95
    %v97 = vsub.f32 1.0, %v96
    %v98 = vmul.f32 %v95, %v97
    %v99 = vadd.f32 %v95, %v98
    %vm100 = vweird.f32 %v95
    %v101 = vsel %vm100, %v95, %v99
    %v102 = vmul.f32 %v49, %v101
    %v103 = vmul.f32 %v52, %v101
    %v104 = vmul.f32 %v55, %v101
    %v105 = vmul.f32 %v58, %v101
    %v106 = vmul.f32 %v61, %v101
    %v107 = vmul.f32 %v64, %v101
    %v108 = vmul.f32 %v67, %v101
    %v109 = vmul.f32 %v70, %v101
    %v110 = vmul.f32 %v73, %v101
    %v111 = vmul.f32 %v76, %v101
    %v112 = vmul.f32 %v79, %v101
    %v113 = vmul.f32 %v82, %v101
    %v114 = vmul.f32 %v85, %v101
    %v115 = vmul.f32 %v88, %v101
    %v116 = vmul.f32 %v91, %v101
    %v117 = vmul.f32 %v94, %v101
    %v118 = vsub.f32 %v30, %v102
    %v119 = vsub.f32 %v31, %v103
    %v120 = vsub.f32 %v32, %v104
    %v121 = vsub.f32 %v33, %v105
    %v122 = vsub.f32 %v34, %v106
    %v123 = vsub.f32 %v35, %v107
    %v124 = vsub.f32 %v36, %v108
    %v125 = vsub.f32 %v37, %v109
    %v126 = vsub.f32 %v38, %v110
    %v127 = vsub.f32 %v39, %v111
    %v128 = vsub.f32 %v40, %v112
    %v129 = vsub.f32 %v41, %v113
    %v130 = vsub.f32 %v42, %v114
    %v131 = vsub.f32 %v43, %v115
    %v132 = vsub.f32 %v44, %v116
    %v133 = vsub.f32 %v45, %v117
    %v134 = vmul.f32 %v118, %v118
    %v135 = vmul.f32 %v119, %v119
    %v136 = vmul.f32 %v120, %v120
    %v137 = vmul.f32 %v121, %v121
    %v138 = vmul.f32 %v122, %v122
    %v139 = vmul.f32 %v123, %v123
    %v140 = vmul.f32 %v124, %v124
    %v141 = vmul.f32 %v125, %v125
    %v142 = vmul.f32 %v126, %v126
    %v143 = vmul.f32 %v127, %v127
    %v144 = vmul.f32 %v128, %v128
    %v145 = vmul.f32 %v129, %v129
    %v146 = vmul.f32 %v130, %v130
    %v147 = vmul.f32 %v131, %v131
    %v148 = vmul.f32 %v132, %v132
    %v149 = vmul.f32 %v133, %v133
    %v150 = vsel %vm46, %v134, 0.0
    %151 = vadd.xlane.f32.xlu0 %v150
    %v152 = vpop.xlane.xlu0 %151
    %v153 = vsel %vm46, %v135, 0.0
    %154 = vadd.xlane.f32.xlu0 %v153
    %v155 = vpop.xlane.xlu0 %154
    %v156 = vsel %vm46, %v136, 0.0
    %157 = vadd.xlane.f32.xlu0 %v156
    %v158 = vpop.xlane.xlu0 %157
    %v159 = vsel %vm46, %v137, 0.0
    %160 = vadd.xlane.f32.xlu0 %v159
    %v161 = vpop.xlane.xlu0 %160
    %v162 = vsel %vm46, %v138, 0.0
    %163 = vadd.xlane.f32.xlu0 %v162
    %v164 = vpop.xlane.xlu0 %163
    %v165 = vsel %vm46, %v139, 0.0
    %166 = vadd.xlane.f32.xlu0 %v165
    %v167 = vpop.xlane.xlu0 %166
    %v168 = vsel %vm46, %v140, 0.0
    %169 = vadd.xlane.f32.xlu0 %v168
    %v170 = vpop.xlane.xlu0 %169
    %v171 = vsel %vm46, %v141, 0.0
    %172 = vadd.xlane.f32.xlu0 %v171
    %v173 = vpop.xlane.xlu0 %172
    %v174 = vsel %vm46, %v142, 0.0
    %175 = vadd.xlane.f32.xlu0 %v174
    %v176 = vpop.xlane.xlu0 %175
    %v177 = vsel %vm46, %v143, 0.0
    %178 = vadd.xlane.f32.xlu0 %v177
    %v179 = vpop.xlane.xlu0 %178
    %v180 = vsel %vm46, %v144, 0.0
    %181 = vadd.xlane.f32.xlu0 %v180
    %v182 = vpop.xlane.xlu0 %181
    %v183 = vsel %vm46, %v145, 0.0
    %184 = vadd.xlane.f32.xlu0 %v183
    %v185 = vpop.xlane.xlu0 %184
    %v186 = vsel %vm46, %v146, 0.0
    %187 = vadd.xlane.f32.xlu0 %v186
    %v188 = vpop.xlane.xlu0 %187
    %v189 = vsel %vm46, %v147, 0.0
    %190 = vadd.xlane.f32.xlu0 %v189
    %v191 = vpop.xlane.xlu0 %190
    %v192 = vsel %vm46, %v148, 0.0
    %193 = vadd.xlane.f32.xlu0 %v192
    %v194 = vpop.xlane.xlu0 %193
    %v195 = vsel %vm46, %v149, 0.0
    %196 = vadd.xlane.f32.xlu0 %v195
    %v197 = vpop.xlane.xlu0 %196
    %v198 = vmul.f32 %v152, %v101
    %v199 = vmul.f32 %v155, %v101
    %v200 = vmul.f32 %v158, %v101
    %v201 = vmul.f32 %v161, %v101
    %v202 = vmul.f32 %v164, %v101
    %v203 = vmul.f32 %v167, %v101
    %v204 = vmul.f32 %v170, %v101
    %v205 = vmul.f32 %v173, %v101
    %v206 = vmul.f32 %v176, %v101
    %v207 = vmul.f32 %v179, %v101
    %v208 = vmul.f32 %v182, %v101
    %v209 = vmul.f32 %v185, %v101
    %v210 = vmul.f32 %v188, %v101
    %v211 = vmul.f32 %v191, %v101
    %v212 = vmul.f32 %v194, %v101
    %v213 = vmul.f32 %v197, %v101
    %v214 = vadd.f32 %v198, 1e-05
    %v215 = vadd.f32 %v199, 1e-05
    %v216 = vadd.f32 %v200, 1e-05
    %v217 = vadd.f32 %v201, 1e-05
    %v218 = vadd.f32 %v202, 1e-05
    %v219 = vadd.f32 %v203, 1e-05
    %v220 = vadd.f32 %v204, 1e-05
    %v221 = vadd.f32 %v205, 1e-05
    %v222 = vadd.f32 %v206, 1e-05
    %v223 = vadd.f32 %v207, 1e-05
    %v224 = vadd.f32 %v208, 1e-05
    %v225 = vadd.f32 %v209, 1e-05
    %v226 = vadd.f32 %v210, 1e-05
    %v227 = vadd.f32 %v211, 1e-05
    %v228 = vadd.f32 %v212, 1e-05
    %v229 = vadd.f32 %v213, 1e-05
    %v230 = vrsqrt.pop %v214
    %v231 = vmul.f32 %v230, %v214
    %v232 = vmul.f32 %v231, %v230
    %v233 = vmul.f32 0.5, %v232
    %v234 = vsub.f32 1.5, %v233
    %v235 = vmul.f32 %v230, %v234
    %vm236 = vweird.f32 %v214
    %vm237 = vweird.f32 %v230
    %vm238 = vmor %vm236, %vm237
    %v239 = vsel %vm238, %v230, %v235
    %v240 = vrsqrt.pop %v215
    %v241 = vmul.f32 %v240, %v215
    %v242 = vmul.f32 %v241, %v240
    %v243 = vmul.f32 0.5, %v242
    %v244 = vsub.f32 1.5, %v243
    %v245 = vmul.f32 %v240, %v244
    %vm246 = vweird.f32 %v215
    %vm247 = vweird.f32 %v240
    %vm248 = vmor %vm246, %vm247
    %v249 = vsel %vm248, %v240, %v245
    %v250 = vrsqrt.pop %v216
    %v251 = vmul.f32 %v250, %v216
    %v252 = vmul.f32 %v251, %v250
    %v253 = vmul.f32 0.5, %v252
    %v254 = vsub.f32 1.5, %v253
    %v255 = vmul.f32 %v250, %v254
    %vm256 = vweird.f32 %v216
    %vm257 = vweird.f32 %v250
    %vm258 = vmor %vm256, %vm257
    %v259 = vsel %vm258, %v250, %v255
    %v260 = vrsqrt.pop %v217
    %v261 = vmul.f32 %v260, %v217
    %v262 = vmul.f32 %v261, %v260
    %v263 = vmul.f32 0.5, %v262
    %v264 = vsub.f32 1.5, %v263
    %v265 = vmul.f32 %v260, %v264
    %vm266 = vweird.f32 %v217
    %vm267 = vweird.f32 %v260
    %vm268 = vmor %vm266, %vm267
    %v269 = vsel %vm268, %v260, %v265
    %v270 = vrsqrt.pop %v218
    %v271 = vmul.f32 %v270, %v218
    %v272 = vmul.f32 %v271, %v270
    %v273 = vmul.f32 0.5, %v272
    %v274 = vsub.f32 1.5, %v273
    %v275 = vmul.f32 %v270, %v274
    %vm276 = vweird.f32 %v218
    %vm277 = vweird.f32 %v270
    %vm278 = vmor %vm276, %vm277
    %v279 = vsel %vm278, %v270, %v275
    %v280 = vrsqrt.pop %v219
    %v281 = vmul.f32 %v280, %v219
    %v282 = vmul.f32 %v281, %v280
    %v283 = vmul.f32 0.5, %v282
    %v284 = vsub.f32 1.5, %v283
    %v285 = vmul.f32 %v280, %v284
    %vm286 = vweird.f32 %v219
    %vm287 = vweird.f32 %v280
    %vm288 = vmor %vm286, %vm287
    %v289 = vsel %vm288, %v280, %v285
    %v290 = vrsqrt.pop %v220
    %v291 = vmul.f32 %v290, %v220
    %v292 = vmul.f32 %v291, %v290
    %v293 = vmul.f32 0.5, %v292
    %v294 = vsub.f32 1.5, %v293
    %v295 = vmul.f32 %v290, %v294
    %vm296 = vweird.f32 %v220
    %vm297 = vweird.f32 %v290
    %vm298 = vmor %vm296, %vm297
    %v299 = vsel %vm298, %v290, %v295
    %v300 = vrsqrt.pop %v221
    %v301 = vmul.f32 %v300, %v221
    %v302 = vmul.f32 %v301, %v300
    %v303 = vmul.f32 0.5, %v302
    %v304 = vsub.f32 1.5, %v303
    %v305 = vmul.f32 %v300, %v304
    %vm306 = vweird.f32 %v221
    %vm307 = vweird.f32 %v300
    %vm308 = vmor %vm306, %vm307
    %v309 = vsel %vm308, %v300, %v305
    %v310 = vrsqrt.pop %v222
    %v311 = vmul.f32 %v310, %v222
    %v312 = vmul.f32 %v311, %v310
    %v313 = vmul.f32 0.5, %v312
    %v314 = vsub.f32 1.5, %v313
    %v315 = vmul.f32 %v310, %v314
    %vm316 = vweird.f32 %v222
    %vm317 = vweird.f32 %v310
    %vm318 = vmor %vm316, %vm317
    %v319 = vsel %vm318, %v310, %v315
    %v320 = vrsqrt.pop %v223
    %v321 = vmul.f32 %v320, %v223
    %v322 = vmul.f32 %v321, %v320
    %v323 = vmul.f32 0.5, %v322
    %v324 = vsub.f32 1.5, %v323
    %v325 = vmul.f32 %v320, %v324
    %vm326 = vweird.f32 %v223
    %vm327 = vweird.f32 %v320
    %vm328 = vmor %vm326, %vm327
    %v329 = vsel %vm328, %v320, %v325
    %v330 = vrsqrt.pop %v224
    %v331 = vmul.f32 %v330, %v224
    %v332 = vmul.f32 %v331, %v330
    %v333 = vmul.f32 0.5, %v332
    %v334 = vsub.f32 1.5, %v333
    %v335 = vmul.f32 %v330, %v334
    %vm336 = vweird.f32 %v224
    %vm337 = vweird.f32 %v330
    %vm338 = vmor %vm336, %vm337
    %v339 = vsel %vm338, %v330, %v335
    %v340 = vrsqrt.pop %v225
    %v341 = vmul.f32 %v340, %v225
    %v342 = vmul.f32 %v341, %v340
    %v343 = vmul.f32 0.5, %v342
    %v344 = vsub.f32 1.5, %v343
    %v345 = vmul.f32 %v340, %v344
    %vm346 = vweird.f32 %v225
    %vm347 = vweird.f32 %v340
    %vm348 = vmor %vm346, %vm347
    %v349 = vsel %vm348, %v340, %v345
    %v350 = vrsqrt.pop %v226
    %v351 = vmul.f32 %v350, %v226
    %v352 = vmul.f32 %v351, %v350
    %v353 = vmul.f32 0.5, %v352
    %v354 = vsub.f32 1.5, %v353
    %v355 = vmul.f32 %v350, %v354
    %vm356 = vweird.f32 %v226
    %vm357 = vweird.f32 %v350
    %vm358 = vmor %vm356, %vm357
    %v359 = vsel %vm358, %v350, %v355
    %v360 = vrsqrt.pop %v227
    %v361 = vmul.f32 %v360, %v227
    %v362 = vmul.f32 %v361, %v360
    %v363 = vmul.f32 0.5, %v362
    %v364 = vsub.f32 1.5, %v363
    %v365 = vmul.f32 %v360, %v364
    %vm366 = vweird.f32 %v227
    %vm367 = vweird.f32 %v360
    %vm368 = vmor %vm366, %vm367
    %v369 = vsel %vm368, %v360, %v365
    %v370 = vrsqrt.pop %v228
    %v371 = vmul.f32 %v370, %v228
    %v372 = vmul.f32 %v371, %v370
    %v373 = vmul.f32 0.5, %v372
    %v374 = vsub.f32 1.5, %v373
    %v375 = vmul.f32 %v370, %v374
    %vm376 = vweird.f32 %v228
    %vm377 = vweird.f32 %v370
    %vm378 = vmor %vm376, %vm377
    %v379 = vsel %vm378, %v370, %v375
    %v380 = vrsqrt.pop %v229
    %v381 = vmul.f32 %v380, %v229
    %v382 = vmul.f32 %v381, %v380
    %v383 = vmul.f32 0.5, %v382
    %v384 = vsub.f32 1.5, %v383
    %v385 = vmul.f32 %v380, %v384
    %vm386 = vweird.f32 %v229
    %vm387 = vweird.f32 %v380
    %vm388 = vmor %vm386, %vm387
    %v389 = vsel %vm388, %v380, %v385
    %v390 = vmul.f32 %v118, %v239
    %v391 = vmul.f32 %v119, %v249
    %v392 = vmul.f32 %v120, %v259
    %v393 = vmul.f32 %v121, %v269
    %v394 = vmul.f32 %v122, %v279
    %v395 = vmul.f32 %v123, %v289
    %v396 = vmul.f32 %v124, %v299
    %v397 = vmul.f32 %v125, %v309
    %v398 = vmul.f32 %v126, %v319
    %v399 = vmul.f32 %v127, %v329
    %v400 = vmul.f32 %v128, %v339
    %v401 = vmul.f32 %v129, %v349
    %v402 = vmul.f32 %v130, %v359
    %v403 = vmul.f32 %v131, %v369
    %v404 = vmul.f32 %v132, %v379
    %v405 = vmul.f32 %v133, %v389
    %v406 = vld [vmem:[%s1] sm:$0x1]
    %v408 = vperm.slane %v406, 0
    %v410 = vmul.f32 %v390, %v408
    %v411 = vmul.f32 %v391, %v408
    %v412 = vmul.f32 %v392, %v408
    %v413 = vmul.f32 %v393, %v408
    %v414 = vmul.f32 %v394, %v408
    %v415 = vmul.f32 %v395, %v408
    %v416 = vmul.f32 %v396, %v408
    %v417 = vmul.f32 %v397, %v408
    %v418 = vmul.f32 %v398, %v408
    %v419 = vmul.f32 %v399, %v408
    %v420 = vmul.f32 %v400, %v408
    %v421 = vmul.f32 %v401, %v408
    %v422 = vmul.f32 %v402, %v408
    %v423 = vmul.f32 %v403, %v408
    %v424 = vmul.f32 %v404, %v408
    %v425 = vmul.f32 %v405, %v408
    %v426 = vld [vmem:[%s2] sm:$0x1]
    %v428 = vperm.slane %v426, 0
    %v430 = vadd.f32 %v410, %v428
    %v431 = vadd.f32 %v411, %v428
    %v432 = vadd.f32 %v412, %v428
    %v433 = vadd.f32 %v413, %v428
    %v434 = vadd.f32 %v414, %v428
    %v435 = vadd.f32 %v415, %v428
    %v436 = vadd.f32 %v416, %v428
    %v437 = vadd.f32 %v417, %v428
    %v438 = vadd.f32 %v418, %v428
    %v439 = vadd.f32 %v419, %v428
    %v440 = vadd.f32 %v420, %v428
    %v441 = vadd.f32 %v421, %v428
    %v442 = vadd.f32 %v422, %v428
    %v443 = vadd.f32 %v423, %v428
    %v444 = vadd.f32 %v424, %v428
    %v445 = vadd.f32 %v425, %v428
    %446 = vst.msk [vmem:[#allocation2] sm:$0xff] %vm46, %v430
    %447 = vst.msk [vmem:[#allocation2 + $0x8] sm:$0xff] %vm46, %v431
    %448 = vst.msk [vmem:[#allocation2 + $0x10] sm:$0xff] %vm46, %v432
    %449 = vst.msk [vmem:[#allocation2 + $0x18] sm:$0xff] %vm46, %v433
    %450 = vst.msk [vmem:[#allocation2 + $0x20] sm:$0xff] %vm46, %v434
    %451 = vst.msk [vmem:[#allocation2 + $0x28] sm:$0xff] %vm46, %v435
    %452 = vst.msk [vmem:[#allocation2 + $0x30] sm:$0xff] %vm46, %v436
    %453 = vst.msk [vmem:[#allocation2 + $0x38] sm:$0xff] %vm46, %v437
    %454 = vst.msk [vmem:[#allocation2 + $0x40] sm:$0xff] %vm46, %v438
    %455 = vst.msk [vmem:[#allocation2 + $0x48] sm:$0xff] %vm46, %v439
    %456 = vst.msk [vmem:[#allocation2 + $0x50] sm:$0xff] %vm46, %v440
    %457 = vst.msk [vmem:[#allocation2 + $0x58] sm:$0xff] %vm46, %v441
    %458 = vst.msk [vmem:[#allocation2 + $0x60] sm:$0xff] %vm46, %v442
    %459 = vst.msk [vmem:[#allocation2 + $0x68] sm:$0xff] %vm46, %v443
    %460 = vst.msk [vmem:[#allocation2 + $0x70] sm:$0xff] %vm46, %v444
    %461 = vst.msk [vmem:[#allocation2 + $0x78] sm:$0xff] %vm46, %v445
    %462 = vst.msk [vmem:[#allocation3] sm:$0xff] %vm46, 0.0
    %463 = vst.msk [vmem:[#allocation3 + $0x8] sm:$0xff] %vm46, 0.0
    %464 = vst.msk [vmem:[#allocation3 + $0x10] sm:$0xff] %vm46, 0.0
    %465 = vst.msk [vmem:[#allocation3 + $0x18] sm:$0xff] %vm46, 0.0
    %466 = vst.msk [vmem:[#allocation3 + $0x20] sm:$0xff] %vm46, 0.0
    %467 = vst.msk [vmem:[#allocation3 + $0x28] sm:$0xff] %vm46, 0.0
    %468 = vst.msk [vmem:[#allocation3 + $0x30] sm:$0xff] %vm46, 0.0
    %469 = vst.msk [vmem:[#allocation3 + $0x38] sm:$0xff] %vm46, 0.0
    %470 = vst.msk [vmem:[#allocation3 + $0x40] sm:$0xff] %vm46, 0.0
    %471 = vst.msk [vmem:[#allocation3 + $0x48] sm:$0xff] %vm46, 0.0
    %472 = vst.msk [vmem:[#allocation3 + $0x50] sm:$0xff] %vm46, 0.0
    %473 = vst.msk [vmem:[#allocation3 + $0x58] sm:$0xff] %vm46, 0.0
    %474 = vst.msk [vmem:[#allocation3 + $0x60] sm:$0xff] %vm46, 0.0
    %475 = vst.msk [vmem:[#allocation3 + $0x68] sm:$0xff] %vm46, 0.0
    %476 = vst.msk [vmem:[#allocation3 + $0x70] sm:$0xff] %vm46, 0.0
    %477 = vst.msk [vmem:[#allocation3 + $0x78] sm:$0xff] %vm46, 0.0
  $region33: #{tpu_custom_call.1} parent=0 // pred_fallthru
    _
  %v478 = vld [vmem:[#allocation2] sm:$0xff]
  %v479 = vld [vmem:[#allocation2 + $0x8] sm:$0xff]
  %v480 = vld [vmem:[#allocation2 + $0x10] sm:$0xff]
  %v481 = vld [vmem:[#allocation2 + $0x18] sm:$0xff]
  %v482 = vld [vmem:[#allocation2 + $0x20] sm:$0xff]
  %v483 = vld [vmem:[#allocation2 + $0x28] sm:$0xff]
  %v484 = vld [vmem:[#allocation2 + $0x30] sm:$0xff]
  %v485 = vld [vmem:[#allocation2 + $0x38] sm:$0xff]
  %v486 = vld [vmem:[#allocation2 + $0x40] sm:$0xff]
  %v487 = vld [vmem:[#allocation2 + $0x48] sm:$0xff]
  %v488 = vld [vmem:[#allocation2 + $0x50] sm:$0xff]
  %v489 = vld [vmem:[#allocation2 + $0x58] sm:$0xff]
  %v490 = vld [vmem:[#allocation2 + $0x60] sm:$0xff]
  %v491 = vld [vmem:[#allocation2 + $0x68] sm:$0xff]
  %v492 = vld [vmem:[#allocation2 + $0x70] sm:$0xff]
  %v493 = vld [vmem:[#allocation2 + $0x78] sm:$0xff]
  %v494 = vld [vmem:[%s3] sm:$0xff]
  %v495 = vld [vmem:[%s3 + $0x8] sm:$0xff]
  %v496 = vld [vmem:[%s3 + $0x10] sm:$0xff]
  %v497 = vld [vmem:[%s3 + $0x18] sm:$0xff]
  %v498 = vld [vmem:[%s4] sm:$0x1]
  %v500 = vperm.slane %v498, 0
  %vm502 = vcmask 261120
  %v504 = vsel %vm502, %v478, 0
  %v507 = vsel %vm502, %v479, 0
  %v510 = vsel %vm502, %v480, 0
  %v513 = vsel %vm502, %v481, 0
  %v516 = vsel %vm502, %v482, 0
  %v519 = vsel %vm502, %v483, 0
  %v522 = vsel %vm502, %v484, 0
  %v525 = vsel %vm502, %v485, 0
  %v528 = vsel %vm502, %v486, 0
  %v531 = vsel %vm502, %v487, 0
  %v534 = vsel %vm502, %v488, 0
  %v537 = vsel %vm502, %v489, 0
  %v540 = vsel %vm502, %v490, 0
  %v543 = vsel %vm502, %v491, 0
  %v546 = vsel %vm502, %v492, 0
  %v549 = vsel %vm502, %v493, 0
  %551 = vmatpush.msra.mxu0 0.0
  %552 = vmatpush.msra.mxu0 0.0
  %553 = vmatpush.msra.mxu0 0.0
  %554 = vmatpush.msra.mxu0 0.0
  %555 = vmatpush.msra.mxu0 0.0
  %556 = vmatpush.msra.mxu0 0.0
  %557 = vmatpush.msra.mxu0 0.0
  %558 = vmatpush.msra.mxu0 0.0
  %559 = vmatpush.msra.mxu0 0.0
  %560 = vmatpush.msra.mxu0 0.0
  %561 = vmatpush.msra.mxu0 0.0
  %562 = vmatpush.msra.mxu0 0.0
  %563 = vmatpush.msra.mxu0 %v497
  %564 = vmatpush.msra.mxu0 %v496
  %565 = vmatpush.msra.mxu0 %v495
  %566 = vmatpush.msra.mxu0 %v494
  %567 = vmatmul.f32.gmra.mxu0 %v504
  %v568 = vpop.f32.mrf.mxu0
  %v569 = vadd.f32 %v500, %v568
  %570 = vmatmul.f32.gmra.mxu0 %v507
  %v571 = vpop.f32.mrf.mxu0
  %v572 = vadd.f32 %v500, %v571
  %573 = vmatmul.f32.gmra.mxu0 %v510
  %v574 = vpop.f32.mrf.mxu0
  %v575 = vadd.f32 %v500, %v574
  %576 = vmatmul.f32.gmra.mxu0 %v513
  %v577 = vpop.f32.mrf.mxu0
  %v578 = vadd.f32 %v500, %v577
  %579 = vmatmul.f32.gmra.mxu0 %v516
  %v580 = vpop.f32.mrf.mxu0
  %v581 = vadd.f32 %v500, %v580
  %582 = vmatmul.f32.gmra.mxu0 %v519
  %v583 = vpop.f32.mrf.mxu0
  %v584 = vadd.f32 %v500, %v583
  %585 = vmatmul.f32.gmra.mxu0 %v522
  %v586 = vpop.f32.mrf.mxu0
  %v587 = vadd.f32 %v500, %v586
  %588 = vmatmul.f32.gmra.mxu0 %v525
  %v589 = vpop.f32.mrf.mxu0
  %v590 = vadd.f32 %v500, %v589
  %591 = vmatmul.f32.gmra.mxu0 %v528
  %v592 = vpop.f32.mrf.mxu0
  %v593 = vadd.f32 %v500, %v592
  %594 = vmatmul.f32.gmra.mxu0 %v531
  %v595 = vpop.f32.mrf.mxu0
  %v596 = vadd.f32 %v500, %v595
  %597 = vmatmul.f32.gmra.mxu0 %v534
  %v598 = vpop.f32.mrf.mxu0
  %v599 = vadd.f32 %v500, %v598
  %600 = vmatmul.f32.gmra.mxu0 %v537
  %v601 = vpop.f32.mrf.mxu0
  %v602 = vadd.f32 %v500, %v601
  %603 = vmatmul.f32.gmra.mxu0 %v540
  %v604 = vpop.f32.mrf.mxu0
  %v605 = vadd.f32 %v500, %v604
  %606 = vmatmul.f32.gmra.mxu0 %v543
  %v607 = vpop.f32.mrf.mxu0
  %v608 = vadd.f32 %v500, %v607
  %609 = vmatmul.f32.gmra.mxu0 %v546
  %v610 = vpop.f32.mrf.mxu0
  %v611 = vadd.f32 %v500, %v610
  %612 = vmatmul.f32.gmra.mxu0 %v549
  %v613 = vpop.f32.mrf.mxu0
  %v614 = vadd.f32 %v500, %v613
  %615 = vdwg.mxu0
  %v616 = vmul.f32 %v569, 0.5
  %v617 = vmul.f32 %v572, 0.5
  %v618 = vmul.f32 %v575, 0.5
  %v619 = vmul.f32 %v578, 0.5
  %v620 = vmul.f32 %v581, 0.5
  %v621 = vmul.f32 %v584, 0.5
  %v622 = vmul.f32 %v587, 0.5
  %v623 = vmul.f32 %v590, 0.5
  %v624 = vmul.f32 %v593, 0.5
  %v625 = vmul.f32 %v596, 0.5
  %v626 = vmul.f32 %v599, 0.5
  %v627 = vmul.f32 %v602, 0.5
  %v628 = vmul.f32 %v605, 0.5
  %v629 = vmul.f32 %v608, 0.5
  %v630 = vmul.f32 %v611, 0.5
  %v631 = vmul.f32 %v614, 0.5
  %v632 = vmul.f32 %v569, 0.70710677
  %v633 = vmul.f32 %v572, 0.70710677
  %v634 = vmul.f32 %v575, 0.70710677
  %v635 = vmul.f32 %v578, 0.70710677
  %v636 = vmul.f32 %v581, 0.70710677
  %v637 = vmul.f32 %v584, 0.70710677
  %v638 = vmul.f32 %v587, 0.70710677
  %v639 = vmul.f32 %v590, 0.70710677
  %v640 = vmul.f32 %v593, 0.70710677
  %v641 = vmul.f32 %v596, 0.70710677
  %v642 = vmul.f32 %v599, 0.70710677
  %v643 = vmul.f32 %v602, 0.70710677
  %v644 = vmul.f32 %v605, 0.70710677
  %v645 = vmul.f32 %v608, 0.70710677
  %v646 = vmul.f32 %v611, 0.70710677
  %v647 = vmul.f32 %v614, 0.70710677
  %v648 = vmul.f32 %v632, %v632
  %v649 = vmin.f32 16.0, %v648
  %v650 = vmul.f32 %v649, 2.1237322e-06
  %v651 = vadd.f32 %v650, 0.00028619796
  %v652 = vmul.f32 %v649, %v651
  %v653 = vadd.f32 %v652, 0.0036580483
  %v654 = vmul.f32 %v649, %v653
  %v655 = vadd.f32 %v654, 0.05243302
  %v656 = vmul.f32 %v649, %v655
  %v657 = vadd.f32 %v656, 0.18741608
  %v658 = vmul.f32 %v649, %v657
  %v659 = vadd.f32 %v658, 1.1283791
  %v660 = vmul.f32 %v632, %v659
  %v661 = vmul.f32 %v649, 3.8918573e-05
  %v662 = vadd.f32 %v661, 0.001143296
  %v663 = vmul.f32 %v649, %v662
  %v664 = vadd.f32 %v663, 0.014752088
  %v665 = vmul.f32 %v649, %v664
  %v666 = vadd.f32 %v665, 0.112945676
  %v667 = vmul.f32 %v649, %v666
  %v668 = vadd.f32 %v667, 0.4994258
  %v669 = vmul.f32 %v649, %v668
  %v670 = vadd.f32 %v669, 1.0
  %v671 = vrcp.pop %v670
  %v672 = vmul.f32 %v670, %v671
  %v673 = vsub.f32 1.0, %v672
  %v674 = vmul.f32 %v671, %v673
  %v675 = vadd.f32 %v671, %v674
  %vm676 = vweird.f32 %v670
  %vm677 = vweird.f32 %v671
  %vm678 = vmor %vm676, %vm677
  %v679 = vsel %vm678, %v671, %v675
  %v680 = vand.u32 2147483647, %v670
  %vm681 = vcmp.eq.f32.partialorder %v680, 8.507059e+37
  %v682 = vand.u32 %v670, 2147483648
  %v683 = vor.u32 1.1754944e-38, %v682
  %v684 = vsel %vm681, %v683, %v679
  %v685 = vmul.f32 %v660, %v684
  %v686 = vmin.f32 %v685, 1.0
  %v687 = vmax.f32 %v686, -1.0
  %v688 = vmul.f32 %v633, %v633
  %v689 = vmin.f32 16.0, %v688
  %v690 = vmul.f32 %v689, 2.1237322e-06
  %v691 = vadd.f32 %v690, 0.00028619796
  %v692 = vmul.f32 %v689, %v691
  %v693 = vadd.f32 %v692, 0.0036580483
  %v694 = vmul.f32 %v689, %v693
  %v695 = vadd.f32 %v694, 0.05243302
  %v696 = vmul.f32 %v689, %v695
  %v697 = vadd.f32 %v696, 0.18741608
  %v698 = vmul.f32 %v689, %v697
  %v699 = vadd.f32 %v698, 1.1283791
  %v700 = vmul.f32 %v633, %v699
  %v701 = vmul.f32 %v689, 3.8918573e-05
  %v702 = vadd.f32 %v701, 0.001143296
  %v703 = vmul.f32 %v689, %v702
  %v704 = vadd.f32 %v703, 0.014752088
  %v705 = vmul.f32 %v689, %v704
  %v706 = vadd.f32 %v705, 0.112945676
  %v707 = vmul.f32 %v689, %v706
  %v708 = vadd.f32 %v707, 0.4994258
  %v709 = vmul.f32 %v689, %v708
  %v710 = vadd.f32 %v709, 1.0
  %v711 = vrcp.pop %v710
  %v712 = vmul.f32 %v710, %v711
  %v713 = vsub.f32 1.0, %v712
  %v714 = vmul.f32 %v711, %v713
  %v715 = vadd.f32 %v711, %v714
  %vm716 = vweird.f32 %v710
  %vm717 = vweird.f32 %v711
  %vm718 = vmor %vm716, %vm717
  %v719 = vsel %vm718, %v711, %v715
  %v720 = vand.u32 2147483647, %v710
  %vm721 = vcmp.eq.f32.partialorder %v720, 8.507059e+37
  %v722 = vand.u32 %v710, 2147483648
  %v723 = vor.u32 1.1754944e-38, %v722
  %v724 = vsel %vm721, %v723, %v719
  %v725 = vmul.f32 %v700, %v724
  %v726 = vmin.f32 %v725, 1.0
  %v727 = vmax.f32 %v726, -1.0
  %v728 = vmul.f32 %v634, %v634
  %v729 = vmin.f32 16.0, %v728
  %v730 = vmul.f32 %v729, 2.1237322e-06
  %v731 = vadd.f32 %v730, 0.00028619796
  %v732 = vmul.f32 %v729, %v731
  %v733 = vadd.f32 %v732, 0.0036580483
  %v734 = vmul.f32 %v729, %v733
  %v735 = vadd.f32 %v734, 0.05243302
  %v736 = vmul.f32 %v729, %v735
  %v737 = vadd.f32 %v736, 0.18741608
  %v738 = vmul.f32 %v729, %v737
  %v739 = vadd.f32 %v738, 1.1283791
  %v740 = vmul.f32 %v634, %v739
  %v741 = vmul.f32 %v729, 3.8918573e-05
  %v742 = vadd.f32 %v741, 0.001143296
  %v743 = vmul.f32 %v729, %v742
  %v744 = vadd.f32 %v743, 0.014752088
  %v745 = vmul.f32 %v729, %v744
  %v746 = vadd.f32 %v745, 0.112945676
  %v747 = vmul.f32 %v729, %v746
  %v748 = vadd.f32 %v747, 0.4994258
  %v749 = vmul.f32 %v729, %v748
  %v750 = vadd.f32 %v749, 1.0
  %v751 = vrcp.pop %v750
  %v752 = vmul.f32 %v750, %v751
  %v753 = vsub.f32 1.0, %v752
  %v754 = vmul.f32 %v751, %v753
  %v755 = vadd.f32 %v751, %v754
  %vm756 = vweird.f32 %v750
  %vm757 = vweird.f32 %v751
  %vm758 = vmor %vm756, %vm757
  %v759 = vsel %vm758, %v751, %v755
  %v760 = vand.u32 2147483647, %v750
  %vm761 = vcmp.eq.f32.partialorder %v760, 8.507059e+37
  %v762 = vand.u32 %v750, 2147483648
  %v763 = vor.u32 1.1754944e-38, %v762
  %v764 = vsel %vm761, %v763, %v759
  %v765 = vmul.f32 %v740, %v764
  %v766 = vmin.f32 %v765, 1.0
  %v767 = vmax.f32 %v766, -1.0
  %v768 = vmul.f32 %v635, %v635
  %v769 = vmin.f32 16.0, %v768
  %v770 = vmul.f32 %v769, 2.1237322e-06
  %v771 = vadd.f32 %v770, 0.00028619796
  %v772 = vmul.f32 %v769, %v771
  %v773 = vadd.f32 %v772, 0.0036580483
  %v774 = vmul.f32 %v769, %v773
  %v775 = vadd.f32 %v774, 0.05243302
  %v776 = vmul.f32 %v769, %v775
  %v777 = vadd.f32 %v776, 0.18741608
  %v778 = vmul.f32 %v769, %v777
  %v779 = vadd.f32 %v778, 1.1283791
  %v780 = vmul.f32 %v635, %v779
  %v781 = vmul.f32 %v769, 3.8918573e-05
  %v782 = vadd.f32 %v781, 0.001143296
  %v783 = vmul.f32 %v769, %v782
  %v784 = vadd.f32 %v783, 0.014752088
  %v785 = vmul.f32 %v769, %v784
  %v786 = vadd.f32 %v785, 0.112945676
  %v787 = vmul.f32 %v769, %v786
  %v788 = vadd.f32 %v787, 0.4994258
  %v789 = vmul.f32 %v769, %v788
  %v790 = vadd.f32 %v789, 1.0
  %v791 = vrcp.pop %v790
  %v792 = vmul.f32 %v790, %v791
  %v793 = vsub.f32 1.0, %v792
  %v794 = vmul.f32 %v791, %v793
  %v795 = vadd.f32 %v791, %v794
  %vm796 = vweird.f32 %v790
  %vm797 = vweird.f32 %v791
  %vm798 = vmor %vm796, %vm797
  %v799 = vsel %vm798, %v791, %v795
  %v800 = vand.u32 2147483647, %v790
  %vm801 = vcmp.eq.f32.partialorder %v800, 8.507059e+37
  %v802 = vand.u32 %v790, 2147483648
  %v803 = vor.u32 1.1754944e-38, %v802
  %v804 = vsel %vm801, %v803, %v799
  %v805 = vmul.f32 %v780, %v804
  %v806 = vmin.f32 %v805, 1.0
  %v807 = vmax.f32 %v806, -1.0
  %v808 = vmul.f32 %v636, %v636
  %v809 = vmin.f32 16.0, %v808
  %v810 = vmul.f32 %v809, 2.1237322e-06
  %v811 = vadd.f32 %v810, 0.00028619796
  %v812 = vmul.f32 %v809, %v811
  %v813 = vadd.f32 %v812, 0.0036580483
  %v814 = vmul.f32 %v809, %v813
  %v815 = vadd.f32 %v814, 0.05243302
  %v816 = vmul.f32 %v809, %v815
  %v817 = vadd.f32 %v816, 0.18741608
  %v818 = vmul.f32 %v809, %v817
  %v819 = vadd.f32 %v818, 1.1283791
  %v820 = vmul.f32 %v636, %v819
  %v821 = vmul.f32 %v809, 3.8918573e-05
  %v822 = vadd.f32 %v821, 0.001143296
  %v823 = vmul.f32 %v809, %v822
  %v824 = vadd.f32 %v823, 0.014752088
  %v825 = vmul.f32 %v809, %v824
  %v826 = vadd.f32 %v825, 0.112945676
  %v827 = vmul.f32 %v809, %v826
  %v828 = vadd.f32 %v827, 0.4994258
  %v829 = vmul.f32 %v809, %v828
  %v830 = vadd.f32 %v829, 1.0
  %v831 = vrcp.pop %v830
  %v832 = vmul.f32 %v830, %v831
  %v833 = vsub.f32 1.0, %v832
  %v834 = vmul.f32 %v831, %v833
  %v835 = vadd.f32 %v831, %v834
  %vm836 = vweird.f32 %v830
  %vm837 = vweird.f32 %v831
  %vm838 = vmor %vm836, %vm837
  %v839 = vsel %vm838, %v831, %v835
  %v840 = vand.u32 2147483647, %v830
  %vm841 = vcmp.eq.f32.partialorder %v840, 8.507059e+37
  %v842 = vand.u32 %v830, 2147483648
  %v843 = vor.u32 1.1754944e-38, %v842
  %v844 = vsel %vm841, %v843, %v839
  %v845 = vmul.f32 %v820, %v844
  %v846 = vmin.f32 %v845, 1.0
  %v847 = vmax.f32 %v846, -1.0
  %v848 = vmul.f32 %v637, %v637
  %v849 = vmin.f32 16.0, %v848
  %v850 = vmul.f32 %v849, 2.1237322e-06
  %v851 = vadd.f32 %v850, 0.00028619796
  %v852 = vmul.f32 %v849, %v851
  %v853 = vadd.f32 %v852, 0.0036580483
  %v854 = vmul.f32 %v849, %v853
  %v855 = vadd.f32 %v854, 0.05243302
  %v856 = vmul.f32 %v849, %v855
  %v857 = vadd.f32 %v856, 0.18741608
  %v858 = vmul.f32 %v849, %v857
  %v859 = vadd.f32 %v858, 1.1283791
  %v860 = vmul.f32 %v637, %v859
  %v861 = vmul.f32 %v849, 3.8918573e-05
  %v862 = vadd.f32 %v861, 0.001143296
  %v863 = vmul.f32 %v849, %v862
  %v864 = vadd.f32 %v863, 0.014752088
  %v865 = vmul.f32 %v849, %v864
  %v866 = vadd.f32 %v865, 0.112945676
  %v867 = vmul.f32 %v849, %v866
  %v868 = vadd.f32 %v867, 0.4994258
  %v869 = vmul.f32 %v849, %v868
  %v870 = vadd.f32 %v869, 1.0
  %v871 = vrcp.pop %v870
  %v872 = vmul.f32 %v870, %v871
  %v873 = vsub.f32 1.0, %v872
  %v874 = vmul.f32 %v871, %v873
  %v875 = vadd.f32 %v871, %v874
  %vm876 = vweird.f32 %v870
  %vm877 = vweird.f32 %v871
  %vm878 = vmor %vm876, %vm877
  %v879 = vsel %vm878, %v871, %v875
  %v880 = vand.u32 2147483647, %v870
  %vm881 = vcmp.eq.f32.partialorder %v880, 8.507059e+37
  %v882 = vand.u32 %v870, 2147483648
  %v883 = vor.u32 1.1754944e-38, %v882
  %v884 = vsel %vm881, %v883, %v879
  %v885 = vmul.f32 %v860, %v884
  %v886 = vmin.f32 %v885, 1.0
  %v887 = vmax.f32 %v886, -1.0
  %v888 = vmul.f32 %v638, %v638
  %v889 = vmin.f32 16.0, %v888
  %v890 = vmul.f32 %v889, 2.1237322e-06
  %v891 = vadd.f32 %v890, 0.00028619796
  %v892 = vmul.f32 %v889, %v891
  %v893 = vadd.f32 %v892, 0.0036580483
  %v894 = vmul.f32 %v889, %v893
  %v895 = vadd.f32 %v894, 0.05243302
  %v896 = vmul.f32 %v889, %v895
  %v897 = vadd.f32 %v896, 0.18741608
  %v898 = vmul.f32 %v889, %v897
  %v899 = vadd.f32 %v898, 1.1283791
  %v900 = vmul.f32 %v638, %v899
  %v901 = vmul.f32 %v889, 3.8918573e-05
  %v902 = vadd.f32 %v901, 0.001143296
  %v903 = vmul.f32 %v889, %v902
  %v904 = vadd.f32 %v903, 0.014752088
  %v905 = vmul.f32 %v889, %v904
  %v906 = vadd.f32 %v905, 0.112945676
  %v907 = vmul.f32 %v889, %v906
  %v908 = vadd.f32 %v907, 0.4994258
  %v909 = vmul.f32 %v889, %v908
  %v910 = vadd.f32 %v909, 1.0
  %v911 = vrcp.pop %v910
  %v912 = vmul.f32 %v910, %v911
  %v913 = vsub.f32 1.0, %v912
  %v914 = vmul.f32 %v911, %v913
  %v915 = vadd.f32 %v911, %v914
  %vm916 = vweird.f32 %v910
  %vm917 = vweird.f32 %v911
  %vm918 = vmor %vm916, %vm917
  %v919 = vsel %vm918, %v911, %v915
  %v920 = vand.u32 2147483647, %v910
  %vm921 = vcmp.eq.f32.partialorder %v920, 8.507059e+37
  %v922 = vand.u32 %v910, 2147483648
  %v923 = vor.u32 1.1754944e-38, %v922
  %v924 = vsel %vm921, %v923, %v919
  %v925 = vmul.f32 %v900, %v924
  %v926 = vmin.f32 %v925, 1.0
  %v927 = vmax.f32 %v926, -1.0
  %v928 = vmul.f32 %v639, %v639
  %v929 = vmin.f32 16.0, %v928
  %v930 = vmul.f32 %v929, 2.1237322e-06
  %v931 = vadd.f32 %v930, 0.00028619796
  %v932 = vmul.f32 %v929, %v931
  %v933 = vadd.f32 %v932, 0.0036580483
  %v934 = vmul.f32 %v929, %v933
  %v935 = vadd.f32 %v934, 0.05243302
  %v936 = vmul.f32 %v929, %v935
  %v937 = vadd.f32 %v936, 0.18741608
  %v938 = vmul.f32 %v929, %v937
  %v939 = vadd.f32 %v938, 1.1283791
  %v940 = vmul.f32 %v639, %v939
  %v941 = vmul.f32 %v929, 3.8918573e-05
  %v942 = vadd.f32 %v941, 0.001143296
  %v943 = vmul.f32 %v929, %v942
  %v944 = vadd.f32 %v943, 0.014752088
  %v945 = vmul.f32 %v929, %v944
  %v946 = vadd.f32 %v945, 0.112945676
  %v947 = vmul.f32 %v929, %v946
  %v948 = vadd.f32 %v947, 0.4994258
  %v949 = vmul.f32 %v929, %v948
  %v950 = vadd.f32 %v949, 1.0
  %v951 = vrcp.pop %v950
  %v952 = vmul.f32 %v950, %v951
  %v953 = vsub.f32 1.0, %v952
  %v954 = vmul.f32 %v951, %v953
  %v955 = vadd.f32 %v951, %v954
  %vm956 = vweird.f32 %v950
  %vm957 = vweird.f32 %v951
  %vm958 = vmor %vm956, %vm957
  %v959 = vsel %vm958, %v951, %v955
  %v960 = vand.u32 2147483647, %v950
  %vm961 = vcmp.eq.f32.partialorder %v960, 8.507059e+37
  %v962 = vand.u32 %v950, 2147483648
  %v963 = vor.u32 1.1754944e-38, %v962
  %v964 = vsel %vm961, %v963, %v959
  %v965 = vmul.f32 %v940, %v964
  %v966 = vmin.f32 %v965, 1.0
  %v967 = vmax.f32 %v966, -1.0
  %v968 = vmul.f32 %v640, %v640
  %v969 = vmin.f32 16.0, %v968
  %v970 = vmul.f32 %v969, 2.1237322e-06
  %v971 = vadd.f32 %v970, 0.00028619796
  %v972 = vmul.f32 %v969, %v971
  %v973 = vadd.f32 %v972, 0.0036580483
  %v974 = vmul.f32 %v969, %v973
  %v975 = vadd.f32 %v974, 0.05243302
  %v976 = vmul.f32 %v969, %v975
  %v977 = vadd.f32 %v976, 0.18741608
  %v978 = vmul.f32 %v969, %v977
  %v979 = vadd.f32 %v978, 1.1283791
  %v980 = vmul.f32 %v640, %v979
  %v981 = vmul.f32 %v969, 3.8918573e-05
  %v982 = vadd.f32 %v981, 0.001143296
  %v983 = vmul.f32 %v969, %v982
  %v984 = vadd.f32 %v983, 0.014752088
  %v985 = vmul.f32 %v969, %v984
  %v986 = vadd.f32 %v985, 0.112945676
  %v987 = vmul.f32 %v969, %v986
  %v988 = vadd.f32 %v987, 0.4994258
  %v989 = vmul.f32 %v969, %v988
  %v990 = vadd.f32 %v989, 1.0
  %v991 = vrcp.pop %v990
  %v992 = vmul.f32 %v990, %v991
  %v993 = vsub.f32 1.0, %v992
  %v994 = vmul.f32 %v991, %v993
  %v995 = vadd.f32 %v991, %v994
  %vm996 = vweird.f32 %v990
  %vm997 = vweird.f32 %v991
  %vm998 = vmor %vm996, %vm997
  %v999 = vsel %vm998, %v991, %v995
  %v1000 = vand.u32 2147483647, %v990
  %vm1001 = vcmp.eq.f32.partialorder %v1000, 8.507059e+37
  %v1002 = vand.u32 %v990, 2147483648
  %v1003 = vor.u32 1.1754944e-38, %v1002
  %v1004 = vsel %vm1001, %v1003, %v999
  %v1005 = vmul.f32 %v980, %v1004
  %v1006 = vmin.f32 %v1005, 1.0
  %v1007 = vmax.f32 %v1006, -1.0
  %v1008 = vmul.f32 %v641, %v641
  %v1009 = vmin.f32 16.0, %v1008
  %v1010 = vmul.f32 %v1009, 2.1237322e-06
  %v1011 = vadd.f32 %v1010, 0.00028619796
  %v1012 = vmul.f32 %v1009, %v1011
  %v1013 = vadd.f32 %v1012, 0.0036580483
  %v1014 = vmul.f32 %v1009, %v1013
  %v1015 = vadd.f32 %v1014, 0.05243302
  %v1016 = vmul.f32 %v1009, %v1015
  %v1017 = vadd.f32 %v1016, 0.18741608
  %v1018 = vmul.f32 %v1009, %v1017
  %v1019 = vadd.f32 %v1018, 1.1283791
  %v1020 = vmul.f32 %v641, %v1019
  %v1021 = vmul.f32 %v1009, 3.8918573e-05
  %v1022 = vadd.f32 %v1021, 0.001143296
  %v1023 = vmul.f32 %v1009, %v1022
  %v1024 = vadd.f32 %v1023, 0.014752088
  %v1025 = vmul.f32 %v1009, %v1024
  %v1026 = vadd.f32 %v1025, 0.112945676
  %v1027 = vmul.f32 %v1009, %v1026
  %v1028 = vadd.f32 %v1027, 0.4994258
  %v1029 = vmul.f32 %v1009, %v1028
  %v1030 = vadd.f32 %v1029, 1.0
  %v1031 = vrcp.pop %v1030
  %v1032 = vmul.f32 %v1030, %v1031
  %v1033 = vsub.f32 1.0, %v1032
  %v1034 = vmul.f32 %v1031, %v1033
  %v1035 = vadd.f32 %v1031, %v1034
  %vm1036 = vweird.f32 %v1030
  %vm1037 = vweird.f32 %v1031
  %vm1038 = vmor %vm1036, %vm1037
  %v1039 = vsel %vm1038, %v1031, %v1035
  %v1040 = vand.u32 2147483647, %v1030
  %vm1041 = vcmp.eq.f32.partialorder %v1040, 8.507059e+37
  %v1042 = vand.u32 %v1030, 2147483648
  %v1043 = vor.u32 1.1754944e-38, %v1042
  %v1044 = vsel %vm1041, %v1043, %v1039
  %v1045 = vmul.f32 %v1020, %v1044
  %v1046 = vmin.f32 %v1045, 1.0
  %v1047 = vmax.f32 %v1046, -1.0
  %v1048 = vmul.f32 %v642, %v642
  %v1049 = vmin.f32 16.0, %v1048
  %v1050 = vmul.f32 %v1049, 2.1237322e-06
  %v1051 = vadd.f32 %v1050, 0.00028619796
  %v1052 = vmul.f32 %v1049, %v1051
  %v1053 = vadd.f32 %v1052, 0.0036580483
  %v1054 = vmul.f32 %v1049, %v1053
  %v1055 = vadd.f32 %v1054, 0.05243302
  %v1056 = vmul.f32 %v1049, %v1055
  %v1057 = vadd.f32 %v1056, 0.18741608
  %v1058 = vmul.f32 %v1049, %v1057
  %v1059 = vadd.f32 %v1058, 1.1283791
  %v1060 = vmul.f32 %v642, %v1059
  %v1061 = vmul.f32 %v1049, 3.8918573e-05
  %v1062 = vadd.f32 %v1061, 0.001143296
  %v1063 = vmul.f32 %v1049, %v1062
  %v1064 = vadd.f32 %v1063, 0.014752088
  %v1065 = vmul.f32 %v1049, %v1064
  %v1066 = vadd.f32 %v1065, 0.112945676
  %v1067 = vmul.f32 %v1049, %v1066
  %v1068 = vadd.f32 %v1067, 0.4994258
  %v1069 = vmul.f32 %v1049, %v1068
  %v1070 = vadd.f32 %v1069, 1.0
  %v1071 = vrcp.pop %v1070
  %v1072 = vmul.f32 %v1070, %v1071
  %v1073 = vsub.f32 1.0, %v1072
  %v1074 = vmul.f32 %v1071, %v1073
  %v1075 = vadd.f32 %v1071, %v1074
  %vm1076 = vweird.f32 %v1070
  %vm1077 = vweird.f32 %v1071
  %vm1078 = vmor %vm1076, %vm1077
  %v1079 = vsel %vm1078, %v1071, %v1075
  %v1080 = vand.u32 2147483647, %v1070
  %vm1081 = vcmp.eq.f32.partialorder %v1080, 8.507059e+37
  %v1082 = vand.u32 %v1070, 2147483648
  %v1083 = vor.u32 1.1754944e-38, %v1082
  %v1084 = vsel %vm1081, %v1083, %v1079
  %v1085 = vmul.f32 %v1060, %v1084
  %v1086 = vmin.f32 %v1085, 1.0
  %v1087 = vmax.f32 %v1086, -1.0
  %v1088 = vmul.f32 %v643, %v643
  %v1089 = vmin.f32 16.0, %v1088
  %v1090 = vmul.f32 %v1089, 2.1237322e-06
  %v1091 = vadd.f32 %v1090, 0.00028619796
  %v1092 = vmul.f32 %v1089, %v1091
  %v1093 = vadd.f32 %v1092, 0.0036580483
  %v1094 = vmul.f32 %v1089, %v1093
  %v1095 = vadd.f32 %v1094, 0.05243302
  %v1096 = vmul.f32 %v1089, %v1095
  %v1097 = vadd.f32 %v1096, 0.18741608
  %v1098 = vmul.f32 %v1089, %v1097
  %v1099 = vadd.f32 %v1098, 1.1283791
  %v1100 = vmul.f32 %v643, %v1099
  %v1101 = vmul.f32 %v1089, 3.8918573e-05
  %v1102 = vadd.f32 %v1101, 0.001143296
  %v1103 = vmul.f32 %v1089, %v1102
  %v1104 = vadd.f32 %v1103, 0.014752088
  %v1105 = vmul.f32 %v1089, %v1104
  %v1106 = vadd.f32 %v1105, 0.112945676
  %v1107 = vmul.f32 %v1089, %v1106
  %v1108 = vadd.f32 %v1107, 0.4994258
  %v1109 = vmul.f32 %v1089, %v1108
  %v1110 = vadd.f32 %v1109, 1.0
  %v1111 = vrcp.pop %v1110
  %v1112 = vmul.f32 %v1110, %v1111
  %v1113 = vsub.f32 1.0, %v1112
  %v1114 = vmul.f32 %v1111, %v1113
  %v1115 = vadd.f32 %v1111, %v1114
  %vm1116 = vweird.f32 %v1110
  %vm1117 = vweird.f32 %v1111
  %vm1118 = vmor %vm1116, %vm1117
  %v1119 = vsel %vm1118, %v1111, %v1115
  %v1120 = vand.u32 2147483647, %v1110
  %vm1121 = vcmp.eq.f32.partialorder %v1120, 8.507059e+37
  %v1122 = vand.u32 %v1110, 2147483648
  %v1123 = vor.u32 1.1754944e-38, %v1122
  %v1124 = vsel %vm1121, %v1123, %v1119
  %v1125 = vmul.f32 %v1100, %v1124
  %v1126 = vmin.f32 %v1125, 1.0
  %v1127 = vmax.f32 %v1126, -1.0
  %v1128 = vmul.f32 %v644, %v644
  %v1129 = vmin.f32 16.0, %v1128
  %v1130 = vmul.f32 %v1129, 2.1237322e-06
  %v1131 = vadd.f32 %v1130, 0.00028619796
  %v1132 = vmul.f32 %v1129, %v1131
  %v1133 = vadd.f32 %v1132, 0.0036580483
  %v1134 = vmul.f32 %v1129, %v1133
  %v1135 = vadd.f32 %v1134, 0.05243302
  %v1136 = vmul.f32 %v1129, %v1135
  %v1137 = vadd.f32 %v1136, 0.18741608
  %v1138 = vmul.f32 %v1129, %v1137
  %v1139 = vadd.f32 %v1138, 1.1283791
  %v1140 = vmul.f32 %v644, %v1139
  %v1141 = vmul.f32 %v1129, 3.8918573e-05
  %v1142 = vadd.f32 %v1141, 0.001143296
  %v1143 = vmul.f32 %v1129, %v1142
  %v1144 = vadd.f32 %v1143, 0.014752088
  %v1145 = vmul.f32 %v1129, %v1144
  %v1146 = vadd.f32 %v1145, 0.112945676
  %v1147 = vmul.f32 %v1129, %v1146
  %v1148 = vadd.f32 %v1147, 0.4994258
  %v1149 = vmul.f32 %v1129, %v1148
  %v1150 = vadd.f32 %v1149, 1.0
  %v1151 = vrcp.pop %v1150
  %v1152 = vmul.f32 %v1150, %v1151
  %v1153 = vsub.f32 1.0, %v1152
  %v1154 = vmul.f32 %v1151, %v1153
  %v1155 = vadd.f32 %v1151, %v1154
  %vm1156 = vweird.f32 %v1150
  %vm1157 = vweird.f32 %v1151
  %vm1158 = vmor %vm1156, %vm1157
  %v1159 = vsel %vm1158, %v1151, %v1155
  %v1160 = vand.u32 2147483647, %v1150
  %vm1161 = vcmp.eq.f32.partialorder %v1160, 8.507059e+37
  %v1162 = vand.u32 %v1150, 2147483648
  %v1163 = vor.u32 1.1754944e-38, %v1162
  %v1164 = vsel %vm1161, %v1163, %v1159
  %v1165 = vmul.f32 %v1140, %v1164
  %v1166 = vmin.f32 %v1165, 1.0
  %v1167 = vmax.f32 %v1166, -1.0
  %v1168 = vmul.f32 %v645, %v645
  %v1169 = vmin.f32 16.0, %v1168
  %v1170 = vmul.f32 %v1169, 2.1237322e-06
  %v1171 = vadd.f32 %v1170, 0.00028619796
  %v1172 = vmul.f32 %v1169, %v1171
  %v1173 = vadd.f32 %v1172, 0.0036580483
  %v1174 = vmul.f32 %v1169, %v1173
  %v1175 = vadd.f32 %v1174, 0.05243302
  %v1176 = vmul.f32 %v1169, %v1175
  %v1177 = vadd.f32 %v1176, 0.18741608
  %v1178 = vmul.f32 %v1169, %v1177
  %v1179 = vadd.f32 %v1178, 1.1283791
  %v1180 = vmul.f32 %v645, %v1179
  %v1181 = vmul.f32 %v1169, 3.8918573e-05
  %v1182 = vadd.f32 %v1181, 0.001143296
  %v1183 = vmul.f32 %v1169, %v1182
  %v1184 = vadd.f32 %v1183, 0.014752088
  %v1185 = vmul.f32 %v1169, %v1184
  %v1186 = vadd.f32 %v1185, 0.112945676
  %v1187 = vmul.f32 %v1169, %v1186
  %v1188 = vadd.f32 %v1187, 0.4994258
  %v1189 = vmul.f32 %v1169, %v1188
  %v1190 = vadd.f32 %v1189, 1.0
  %v1191 = vrcp.pop %v1190
  %v1192 = vmul.f32 %v1190, %v1191
  %v1193 = vsub.f32 1.0, %v1192
  %v1194 = vmul.f32 %v1191, %v1193
  %v1195 = vadd.f32 %v1191, %v1194
  %vm1196 = vweird.f32 %v1190
  %vm1197 = vweird.f32 %v1191
  %vm1198 = vmor %vm1196, %vm1197
  %v1199 = vsel %vm1198, %v1191, %v1195
  %v1200 = vand.u32 2147483647, %v1190
  %vm1201 = vcmp.eq.f32.partialorder %v1200, 8.507059e+37
  %v1202 = vand.u32 %v1190, 2147483648
  %v1203 = vor.u32 1.1754944e-38, %v1202
  %v1204 = vsel %vm1201, %v1203, %v1199
  %v1205 = vmul.f32 %v1180, %v1204
  %v1206 = vmin.f32 %v1205, 1.0
  %v1207 = vmax.f32 %v1206, -1.0
  %v1208 = vmul.f32 %v646, %v646
  %v1209 = vmin.f32 16.0, %v1208
  %v1210 = vmul.f32 %v1209, 2.1237322e-06
  %v1211 = vadd.f32 %v1210, 0.00028619796
  %v1212 = vmul.f32 %v1209, %v1211
  %v1213 = vadd.f32 %v1212, 0.0036580483
  %v1214 = vmul.f32 %v1209, %v1213
  %v1215 = vadd.f32 %v1214, 0.05243302
  %v1216 = vmul.f32 %v1209, %v1215
  %v1217 = vadd.f32 %v1216, 0.18741608
  %v1218 = vmul.f32 %v1209, %v1217
  %v1219 = vadd.f32 %v1218, 1.1283791
  %v1220 = vmul.f32 %v646, %v1219
  %v1221 = vmul.f32 %v1209, 3.8918573e-05
  %v1222 = vadd.f32 %v1221, 0.001143296
  %v1223 = vmul.f32 %v1209, %v1222
  %v1224 = vadd.f32 %v1223, 0.014752088
  %v1225 = vmul.f32 %v1209, %v1224
  %v1226 = vadd.f32 %v1225, 0.112945676
  %v1227 = vmul.f32 %v1209, %v1226
  %v1228 = vadd.f32 %v1227, 0.4994258
  %v1229 = vmul.f32 %v1209, %v1228
  %v1230 = vadd.f32 %v1229, 1.0
  %v1231 = vrcp.pop %v1230
  %v1232 = vmul.f32 %v1230, %v1231
  %v1233 = vsub.f32 1.0, %v1232
  %v1234 = vmul.f32 %v1231, %v1233
  %v1235 = vadd.f32 %v1231, %v1234
  %vm1236 = vweird.f32 %v1230
  %vm1237 = vweird.f32 %v1231
  %vm1238 = vmor %vm1236, %vm1237
  %v1239 = vsel %vm1238, %v1231, %v1235
  %v1240 = vand.u32 2147483647, %v1230
  %vm1241 = vcmp.eq.f32.partialorder %v1240, 8.507059e+37
  %v1242 = vand.u32 %v1230, 2147483648
  %v1243 = vor.u32 1.1754944e-38, %v1242
  %v1244 = vsel %vm1241, %v1243, %v1239
  %v1245 = vmul.f32 %v1220, %v1244
  %v1246 = vmin.f32 %v1245, 1.0
  %v1247 = vmax.f32 %v1246, -1.0
  %v1248 = vmul.f32 %v647, %v647
  %v1249 = vmin.f32 16.0, %v1248
  %v1250 = vmul.f32 %v1249, 2.1237322e-06
  %v1251 = vadd.f32 %v1250, 0.00028619796
  %v1252 = vmul.f32 %v1249, %v1251
  %v1253 = vadd.f32 %v1252, 0.0036580483
  %v1254 = vmul.f32 %v1249, %v1253
  %v1255 = vadd.f32 %v1254, 0.05243302
  %v1256 = vmul.f32 %v1249, %v1255
  %v1257 = vadd.f32 %v1256, 0.18741608
  %v1258 = vmul.f32 %v1249, %v1257
  %v1259 = vadd.f32 %v1258, 1.1283791
  %v1260 = vmul.f32 %v647, %v1259
  %v1261 = vmul.f32 %v1249, 3.8918573e-05
  %v1262 = vadd.f32 %v1261, 0.001143296
  %v1263 = vmul.f32 %v1249, %v1262
  %v1264 = vadd.f32 %v1263, 0.014752088
  %v1265 = vmul.f32 %v1249, %v1264
  %v1266 = vadd.f32 %v1265, 0.112945676
  %v1267 = vmul.f32 %v1249, %v1266
  %v1268 = vadd.f32 %v1267, 0.4994258
  %v1269 = vmul.f32 %v1249, %v1268
  %v1270 = vadd.f32 %v1269, 1.0
  %v1271 = vrcp.pop %v1270
  %v1272 = vmul.f32 %v1270, %v1271
  %v1273 = vsub.f32 1.0, %v1272
  %v1274 = vmul.f32 %v1271, %v1273
  %v1275 = vadd.f32 %v1271, %v1274
  %vm1276 = vweird.f32 %v1270
  %vm1277 = vweird.f32 %v1271
  %vm1278 = vmor %vm1276, %vm1277
  %v1279 = vsel %vm1278, %v1271, %v1275
  %v1280 = vand.u32 2147483647, %v1270
  %vm1281 = vcmp.eq.f32.partialorder %v1280, 8.507059e+37
  %v1282 = vand.u32 %v1270, 2147483648
  %v1283 = vor.u32 1.1754944e-38, %v1282
  %v1284 = vsel %vm1281, %v1283, %v1279
  %v1285 = vmul.f32 %v1260, %v1284
  %v1286 = vmin.f32 %v1285, 1.0
  %v1287 = vmax.f32 %v1286, -1.0
  %v1288 = vadd.f32 %v687, 1.0
  %v1289 = vadd.f32 %v727, 1.0
  %v1290 = vadd.f32 %v767, 1.0
  %v1291 = vadd.f32 %v807, 1.0
  %v1292 = vadd.f32 %v847, 1.0
  %v1293 = vadd.f32 %v887, 1.0
  %v1294 = vadd.f32 %v927, 1.0
  %v1295 = vadd.f32 %v967, 1.0
  %v1296 = vadd.f32 %v1007, 1.0
  %v1297 = vadd.f32 %v1047, 1.0
  %v1298 = vadd.f32 %v1087, 1.0
  %v1299 = vadd.f32 %v1127, 1.0
  %v1300 = vadd.f32 %v1167, 1.0
  %v1301 = vadd.f32 %v1207, 1.0
  %v1302 = vadd.f32 %v1247, 1.0
  %v1303 = vadd.f32 %v1287, 1.0
  %v1304 = vmul.f32 %v616, %v1288
  %v1305 = vmul.f32 %v617, %v1289
  %v1306 = vmul.f32 %v618, %v1290
  %v1307 = vmul.f32 %v619, %v1291
  %v1308 = vmul.f32 %v620, %v1292
  %v1309 = vmul.f32 %v621, %v1293
  %v1310 = vmul.f32 %v622, %v1294
  %v1311 = vmul.f32 %v623, %v1295
  %v1312 = vmul.f32 %v624, %v1296
  %v1313 = vmul.f32 %v625, %v1297
  %v1314 = vmul.f32 %v626, %v1298
  %v1315 = vmul.f32 %v627, %v1299
  %v1316 = vmul.f32 %v628, %v1300
  %v1317 = vmul.f32 %v629, %v1301
  %v1318 = vmul.f32 %v630, %v1302
  %v1319 = vmul.f32 %v631, %v1303
  %v1320 = vld [vmem:[#allocation3] sm:$0xff]
  %v1321 = vld [vmem:[#allocation3 + $0x8] sm:$0xff]
  %v1322 = vld [vmem:[#allocation3 + $0x10] sm:$0xff]
  %v1323 = vld [vmem:[#allocation3 + $0x18] sm:$0xff]
  %v1324 = vld [vmem:[#allocation3 + $0x20] sm:$0xff]
  %v1325 = vld [vmem:[#allocation3 + $0x28] sm:$0xff]
  %v1326 = vld [vmem:[#allocation3 + $0x30] sm:$0xff]
  %v1327 = vld [vmem:[#allocation3 + $0x38] sm:$0xff]
  %v1328 = vld [vmem:[#allocation3 + $0x40] sm:$0xff]
  %v1329 = vld [vmem:[#allocation3 + $0x48] sm:$0xff]
  %v1330 = vld [vmem:[#allocation3 + $0x50] sm:$0xff]
  %v1331 = vld [vmem:[#allocation3 + $0x58] sm:$0xff]
  %v1332 = vld [vmem:[#allocation3 + $0x60] sm:$0xff]
  %v1333 = vld [vmem:[#allocation3 + $0x68] sm:$0xff]
  %v1334 = vld [vmem:[#allocation3 + $0x70] sm:$0xff]
  %v1335 = vld [vmem:[#allocation3 + $0x78] sm:$0xff]
  %v1336 = vld [vmem:[%s5] sm:$0xff]
  %v1337 = vld [vmem:[%s5 + $0x8] sm:$0xff]
  %v1338 = vld [vmem:[%s5 + $0x10] sm:$0xff]
  %v1339 = vld [vmem:[%s5 + $0x18] sm:$0xff]
  %v1340 = vld [vmem:[%s5 + $0x20] sm:$0xff]
  %v1341 = vld [vmem:[%s5 + $0x28] sm:$0xff]
  %v1342 = vld [vmem:[%s5 + $0x30] sm:$0xff]
  %v1343 = vld [vmem:[%s5 + $0x38] sm:$0xff]
  %v1344 = vld [vmem:[%s5 + $0x40] sm:$0xff]
  %v1345 = vld [vmem:[%s5 + $0x48] sm:$0xff]
  %v1346 = vld [vmem:[%s5 + $0x50] sm:$0xff]
  %v1347 = vld [vmem:[%s5 + $0x58] sm:$0xff]
  %v1348 = vld [vmem:[%s5 + $0x60] sm:$0xff]
  %v1349 = vld [vmem:[%s5 + $0x68] sm:$0xff]
  %v1350 = vld [vmem:[%s5 + $0x70] sm:$0xff]
  %v1351 = vld [vmem:[%s5 + $0x78] sm:$0xff]
  %1352 = vmatpush.msra.mxu0 %v1351
  %1353 = vmatpush.msra.mxu0 %v1350
  %1354 = vmatpush.msra.mxu0 %v1349
  %1355 = vmatpush.msra.mxu0 %v1348
  %1356 = vmatpush.msra.mxu0 %v1347
  %1357 = vmatpush.msra.mxu0 %v1346
  %1358 = vmatpush.msra.mxu0 %v1345
  %1359 = vmatpush.msra.mxu0 %v1344
  %1360 = vmatpush.msra.mxu0 %v1343
  %1361 = vmatpush.msra.mxu0 %v1342
  %1362 = vmatpush.msra.mxu0 %v1341
  %1363 = vmatpush.msra.mxu0 %v1340
  %1364 = vmatpush.msra.mxu0 %v1339
  %1365 = vmatpush.msra.mxu0 %v1338
  %1366 = vmatpush.msra.mxu0 %v1337
  %1367 = vmatpush.msra.mxu0 %v1336
  %1368 = vmatmul.f32.gmra.mxu0 %v1304
  %v1369 = vpop.f32.mrf.mxu0
  %v1370 = vadd.f32 0.0, %v1369
  %1371 = vmatmul.f32.gmra.mxu0 %v1305
  %v1372 = vpop.f32.mrf.mxu0
  %v1373 = vadd.f32 0.0, %v1372
  %1374 = vmatmul.f32.gmra.mxu0 %v1306
  %v1375 = vpop.f32.mrf.mxu0
  %v1376 = vadd.f32 0.0, %v1375
  %1377 = vmatmul.f32.gmra.mxu0 %v1307
  %v1378 = vpop.f32.mrf.mxu0
  %v1379 = vadd.f32 0.0, %v1378
  %1380 = vmatmul.f32.gmra.mxu0 %v1308
  %v1381 = vpop.f32.mrf.mxu0
  %v1382 = vadd.f32 0.0, %v1381
  %1383 = vmatmul.f32.gmra.mxu0 %v1309
  %v1384 = vpop.f32.mrf.mxu0
  %v1385 = vadd.f32 0.0, %v1384
  %1386 = vmatmul.f32.gmra.mxu0 %v1310
  %v1387 = vpop.f32.mrf.mxu0
  %v1388 = vadd.f32 0.0, %v1387
  %1389 = vmatmul.f32.gmra.mxu0 %v1311
  %v1390 = vpop.f32.mrf.mxu0
  %v1391 = vadd.f32 0.0, %v1390
  %1392 = vmatmul.f32.gmra.mxu0 %v1312
  %v1393 = vpop.f32.mrf.mxu0
  %v1394 = vadd.f32 0.0, %v1393
  %1395 = vmatmul.f32.gmra.mxu0 %v1313
  %v1396 = vpop.f32.mrf.mxu0
  %v1397 = vadd.f32 0.0, %v1396
  %1398 = vmatmul.f32.gmra.mxu0 %v1314
  %v1399 = vpop.f32.mrf.mxu0
  %v1400 = vadd.f32 0.0, %v1399
  %1401 = vmatmul.f32.gmra.mxu0 %v1315
  %v1402 = vpop.f32.mrf.mxu0
  %v1403 = vadd.f32 0.0, %v1402
  %1404 = vmatmul.f32.gmra.mxu0 %v1316
  %v1405 = vpop.f32.mrf.mxu0
  %v1406 = vadd.f32 0.0, %v1405
  %1407 = vmatmul.f32.gmra.mxu0 %v1317
  %v1408 = vpop.f32.mrf.mxu0
  %v1409 = vadd.f32 0.0, %v1408
  %1410 = vmatmul.f32.gmra.mxu0 %v1318
  %v1411 = vpop.f32.mrf.mxu0
  %v1412 = vadd.f32 0.0, %v1411
  %1413 = vmatmul.f32.gmra.mxu0 %v1319
  %v1414 = vpop.f32.mrf.mxu0
  %v1415 = vadd.f32 0.0, %v1414
  %1416 = vdwg.mxu0
  %v1417 = vadd.f32 %v1320, %v1370
  %v1418 = vadd.f32 %v1321, %v1373
  %v1419 = vadd.f32 %v1322, %v1376
  %v1420 = vadd.f32 %v1323, %v1379
  %v1421 = vadd.f32 %v1324, %v1382
  %v1422 = vadd.f32 %v1325, %v1385
  %v1423 = vadd.f32 %v1326, %v1388
  %v1424 = vadd.f32 %v1327, %v1391
  %v1425 = vadd.f32 %v1328, %v1394
  %v1426 = vadd.f32 %v1329, %v1397
  %v1427 = vadd.f32 %v1330, %v1400
  %v1428 = vadd.f32 %v1331, %v1403
  %v1429 = vadd.f32 %v1332, %v1406
  %v1430 = vadd.f32 %v1333, %v1409
  %v1431 = vadd.f32 %v1334, %v1412
  %v1432 = vadd.f32 %v1335, %v1415
  %1433 = vst.msk [vmem:[#allocation3] sm:$0xff] %vm502, %v1417
  %1434 = vst.msk [vmem:[#allocation3 + $0x8] sm:$0xff] %vm502, %v1418
  %1435 = vst.msk [vmem:[#allocation3 + $0x10] sm:$0xff] %vm502, %v1419
  %1436 = vst.msk [vmem:[#allocation3 + $0x18] sm:$0xff] %vm502, %v1420
  %1437 = vst.msk [vmem:[#allocation3 + $0x20] sm:$0xff] %vm502, %v1421
  %1438 = vst.msk [vmem:[#allocation3 + $0x28] sm:$0xff] %vm502, %v1422
  %1439 = vst.msk [vmem:[#allocation3 + $0x30] sm:$0xff] %vm502, %v1423
  %1440 = vst.msk [vmem:[#allocation3 + $0x38] sm:$0xff] %vm502, %v1424
  %1441 = vst.msk [vmem:[#allocation3 + $0x40] sm:$0xff] %vm502, %v1425
  %1442 = vst.msk [vmem:[#allocation3 + $0x48] sm:$0xff] %vm502, %v1426
  %1443 = vst.msk [vmem:[#allocation3 + $0x50] sm:$0xff] %vm502, %v1427
  %1444 = vst.msk [vmem:[#allocation3 + $0x58] sm:$0xff] %vm502, %v1428
  %1445 = vst.msk [vmem:[#allocation3 + $0x60] sm:$0xff] %vm502, %v1429
  %1446 = vst.msk [vmem:[#allocation3 + $0x68] sm:$0xff] %vm502, %v1430
  %1447 = vst.msk [vmem:[#allocation3 + $0x70] sm:$0xff] %vm502, %v1431
  %1448 = vst.msk [vmem:[#allocation3 + $0x78] sm:$0xff] %vm502, %v1432
  // Predicated region
  $region34: #{tpu_custom_call.1} parent=0 // pred_check
    %p1449 = pneg %p26
  $region35: #{tpu_custom_call.1} parent=0 // pred_check_branch
    %1451 = sbr.rel (%p1449) target = $region37
  $region36: #{tpu_custom_call.1} parent=0 // pred_region
    %v1452 = vld [vmem:[#allocation3] sm:$0xff]
    %v1453 = vld [vmem:[#allocation3 + $0x8] sm:$0xff]
    %v1454 = vld [vmem:[#allocation3 + $0x10] sm:$0xff]
    %v1455 = vld [vmem:[#allocation3 + $0x18] sm:$0xff]
    %v1456 = vld [vmem:[#allocation3 + $0x20] sm:$0xff]
    %v1457 = vld [vmem:[#allocation3 + $0x28] sm:$0xff]
    %v1458 = vld [vmem:[#allocation3 + $0x30] sm:$0xff]
    %v1459 = vld [vmem:[#allocation3 + $0x38] sm:$0xff]
    %v1460 = vld [vmem:[#allocation3 + $0x40] sm:$0xff]
    %v1461 = vld [vmem:[#allocation3 + $0x48] sm:$0xff]
    %v1462 = vld [vmem:[#allocation3 + $0x50] sm:$0xff]
    %v1463 = vld [vmem:[#allocation3 + $0x58] sm:$0xff]
    %v1464 = vld [vmem:[#allocation3 + $0x60] sm:$0xff]
    %v1465 = vld [vmem:[#allocation3 + $0x68] sm:$0xff]
    %v1466 = vld [vmem:[#allocation3 + $0x70] sm:$0xff]
    %v1467 = vld [vmem:[#allocation3 + $0x78] sm:$0xff]
    %v1468 = vld [vmem:[%s6] sm:$0x1]
    %v1470 = vperm.slane %v1468, 0
    %v1472 = vadd.f32 %v1452, %v1470
    %v1473 = vadd.f32 %v1453, %v1470
    %v1474 = vadd.f32 %v1454, %v1470
    %v1475 = vadd.f32 %v1455, %v1470
    %v1476 = vadd.f32 %v1456, %v1470
    %v1477 = vadd.f32 %v1457, %v1470
    %v1478 = vadd.f32 %v1458, %v1470
    %v1479 = vadd.f32 %v1459, %v1470
    %v1480 = vadd.f32 %v1460, %v1470
    %v1481 = vadd.f32 %v1461, %v1470
    %v1482 = vadd.f32 %v1462, %v1470
    %v1483 = vadd.f32 %v1463, %v1470
    %v1484 = vadd.f32 %v1464, %v1470
    %v1485 = vadd.f32 %v1465, %v1470
    %v1486 = vadd.f32 %v1466, %v1470
    %v1487 = vadd.f32 %v1467, %v1470
    %v1488 = vld [vmem:[%s0] sm:$0xff]
    %v1489 = vld [vmem:[%s0 + $0x8] sm:$0xff]
    %v1490 = vld [vmem:[%s0 + $0x10] sm:$0xff]
    %v1491 = vld [vmem:[%s0 + $0x18] sm:$0xff]
    %v1492 = vld [vmem:[%s0 + $0x20] sm:$0xff]
    %v1493 = vld [vmem:[%s0 + $0x28] sm:$0xff]
    %v1494 = vld [vmem:[%s0 + $0x30] sm:$0xff]
    %v1495 = vld [vmem:[%s0 + $0x38] sm:$0xff]
    %v1496 = vld [vmem:[%s0 + $0x40] sm:$0xff]
    %v1497 = vld [vmem:[%s0 + $0x48] sm:$0xff]
    %v1498 = vld [vmem:[%s0 + $0x50] sm:$0xff]
    %v1499 = vld [vmem:[%s0 + $0x58] sm:$0xff]
    %v1500 = vld [vmem:[%s0 + $0x60] sm:$0xff]
    %v1501 = vld [vmem:[%s0 + $0x68] sm:$0xff]
    %v1502 = vld [vmem:[%s0 + $0x70] sm:$0xff]
    %v1503 = vld [vmem:[%s0 + $0x78] sm:$0xff]
    %v1504 = vadd.f32 %v1472, %v1488
    %v1505 = vadd.f32 %v1473, %v1489
    %v1506 = vadd.f32 %v1474, %v1490
    %v1507 = vadd.f32 %v1475, %v1491
    %v1508 = vadd.f32 %v1476, %v1492
    %v1509 = vadd.f32 %v1477, %v1493
    %v1510 = vadd.f32 %v1478, %v1494
    %v1511 = vadd.f32 %v1479, %v1495
    %v1512 = vadd.f32 %v1480, %v1496
    %v1513 = vadd.f32 %v1481, %v1497
    %v1514 = vadd.f32 %v1482, %v1498
    %v1515 = vadd.f32 %v1483, %v1499
    %v1516 = vadd.f32 %v1484, %v1500
    %v1517 = vadd.f32 %v1485, %v1501
    %v1518 = vadd.f32 %v1486, %v1502
    %v1519 = vadd.f32 %v1487, %v1503
    %1520 = vst.msk [vmem:[%s7] sm:$0xff] %vm502, %v1504
    %1521 = vst.msk [vmem:[%s7 + $0x8] sm:$0xff] %vm502, %v1505
    %1522 = vst.msk [vmem:[%s7 + $0x10] sm:$0xff] %vm502, %v1506
    %1523 = vst.msk [vmem:[%s7 + $0x18] sm:$0xff] %vm502, %v1507
    %1524 = vst.msk [vmem:[%s7 + $0x20] sm:$0xff] %vm502, %v1508
    %1525 = vst.msk [vmem:[%s7 + $0x28] sm:$0xff] %vm502, %v1509
    %1526 = vst.msk [vmem:[%s7 + $0x30] sm:$0xff] %vm502, %v1510
    %1527 = vst.msk [vmem:[%s7 + $0x38] sm:$0xff] %vm502, %v1511
    %1528 = vst.msk [vmem:[%s7 + $0x40] sm:$0xff] %vm502, %v1512
    %1529 = vst.msk [vmem:[%s7 + $0x48] sm:$0xff] %vm502, %v1513
    %1530 = vst.msk [vmem:[%s7 + $0x50] sm:$0xff] %vm502, %v1514
    %1531 = vst.msk [vmem:[%s7 + $0x58] sm:$0xff] %vm502, %v1515
    %1532 = vst.msk [vmem:[%s7 + $0x60] sm:$0xff] %vm502, %v1516
    %1533 = vst.msk [vmem:[%s7 + $0x68] sm:$0xff] %vm502, %v1517
    %1534 = vst.msk [vmem:[%s7 + $0x70] sm:$0xff] %vm502, %v1518
    %1535 = vst.msk [vmem:[%s7 + $0x78] sm:$0xff] %vm502, %v1519
  $region37: #{tpu_custom_call.1} parent=0 // pred_fallthru
    _
  // Predicated region
  $region38: #{tpu_custom_call.1} parent=0 // pred_check
    _
  $region39: #{tpu_custom_call.1} parent=0 // pred_check_branch
    %1537 = sbr.rel (0) target = $region41
  $region40: #{tpu_custom_call.1} parent=0 // pred_region
    _
  $region41: #{tpu_custom_call.1} parent=0 // pred_fallthru
    _
  // Predicated region
  $region42: #{tpu_custom_call.1} parent=0 // pred_check
    _
  $region43: #{tpu_custom_call.1} parent=0 // pred_check_branch
    %1539 = sbr.rel (0) target = $region45
  $region44: #{tpu_custom_call.1} parent=0 // pred_region
    _
  $region45: #{tpu_custom_call.1} parent=0 // pred_fallthru
    _

</llo_original>
